<compile_context>
chip_gen: v7x
topology: tpu7x:2x2x1
jax: 0.10.0
libtpu: 0.0.40
codegen_flags: <defaults>
</compile_context>

<pallas_src>
import jax
import jax.numpy as jnp
from jax.experimental import pallas as pl
from jax.experimental.pallas import tpu as pltpu


def _round_up(x, m):
    return (x + m - 1) // m * m


def _head_kernel(x_ref, fb_ref, w1_ref, w2_ref, b2_ref, out_ref):
    """One batch tile of: spatial-sum -> fc1(img) + feat_bias -> ReLU -> fc2.

    x_ref:   (TB, H, W, C)   backbone output block (NHWC)
    fb_ref:  (TB, HID)       f32 per-row bias = features @ w1_feat + fc1_b
    w1_ref:  (C, HID)        fc1 image weight, pre-transposed, 1/(H*W) folded in
    w2_ref:  (HID, N_pad)    fc2 weight, pre-transposed, column-padded
    b2_ref:  (1, N_pad)      fc2 bias (f32, column-padded)
    out_ref: (TB, N_pad)     f32 logits block (lane-dense padded)
    """
    _, H, W, _ = x_ref.shape

    # AdaptiveAvgPool2d(1) + flatten == mean over (H, W).  The 1/(H*W) scale is
    # folded into w1 at prep time, so only the spatial SUM is needed here.
    # Accumulate over H with f32 adds on (TB, W, C) slices (no full-tile f32
    # upcast), then one cross-sublane (XLU) reduce over W.
    acc = x_ref[:, 0, :, :].astype(jnp.float32)
    for i in range(1, H):          # H is static and small at the final stage
        acc = acc + x_ref[:, i, :, :].astype(jnp.float32)
    pooled = jnp.sum(acc, axis=1)                                  # (TB, C) f32

    h = jnp.dot(pooled.astype(w1_ref.dtype), w1_ref[...],
                preferred_element_type=jnp.float32) + fb_ref[...]
    h = jnp.maximum(h, 0.0)                                        # ReLU

    out = jnp.dot(h.astype(w2_ref.dtype), w2_ref[...],
                  preferred_element_type=jnp.float32) + b2_ref[...]
    out_ref[...] = out.astype(out_ref.dtype)


def prepare_head_params(fc1_w, fc1_b, fc2_w, fc2_b, *, pool_hw, c_img=768,
                        compute_dtype=jnp.bfloat16):
    """One-time parameter prep (NOT per forward call):
      * transpose weights to (in, out) layout,
      * split fc1 into image rows (first 768) and extra-feature rows; feature
        rows stay f32 and are applied outside the kernel as a per-row bias,
      * fold the AdaptiveAvgPool2d 1/(H*W) scale into the image rows of fc1,
      * pad the class dim to a lane-dense multiple of 128,
      * cast matmul weights to the MXU compute dtype (biases stay f32)."""
    hidden, in1 = fc1_w.shape
    f_extra = in1 - c_img
    n_cls, hidden2 = fc2_w.shape
    assert hidden2 == hidden
    n_pad = _round_up(max(n_cls, 1), 128)
    inv_hw = 1.0 / float(pool_hw[0] * pool_hw[1])

    w1_t = jnp.transpose(fc1_w).astype(jnp.float32)               # (in1, hidden)
    w1_img = (w1_t[:c_img] * inv_hw).astype(compute_dtype)        # (768, hidden)
    w1_feat = w1_t[c_img:]                                        # (F, hidden) f32
    w2 = jnp.pad(jnp.transpose(fc2_w), ((0, 0), (0, n_pad - n_cls)))
    b2 = jnp.pad(fc2_b, (0, n_pad - n_cls))

    return dict(
        w1_img=w1_img,
        w1_feat=w1_feat,
        b1=fc1_b.astype(jnp.float32),
        w2=w2.astype(compute_dtype),
        b2=b2.reshape(1, n_pad).astype(jnp.float32),
        c_img=c_img, f_extra=f_extra, hidden=hidden,
        n_cls=n_cls, n_pad=n_pad,
        pool_hw=(int(pool_hw[0]), int(pool_hw[1])),
    )


def _per_row_vmem_bytes(h, w, c, x_item, hidden, n_pad):
    """VMEM bytes one batch row costs inside a grid step: default Buffered(2)
    double-buffered streams plus the f32 compute intermediates."""
    streams = 2 * (h * w * c * x_item          # x block
                   + hidden * 4                # feat-bias block (f32)
                   + n_pad * 4)                # out block (f32)
    interm = (w * c * 4                        # (TB, W, C) f32 H-accumulator
              + c * 4 + c * x_item             # pooled f32 + matmul-dtype cast
              + 2 * hidden * 4                 # fc1 accumulator + ReLU result
              + n_pad * 4)                     # fc2 accumulator
    return streams + interm


def _tile_and_vmem_limit(batch, h, w, c, x_item, hidden, n_pad,
                         resident_bytes, tb_override=None):
    """Pick the batch tile from a per-generation VMEM budget and return the
    matching explicit vmem_limit_bytes for CompilerParams."""
    try:
        vmem_cap = int(pltpu.get_tpu_info().vmem_capacity_bytes)  # per-TensorCore
    except Exception:
        vmem_cap = 64 << 20                    # assume tightest (v7x: 64 MiB/TC)
    vmem_cap = min(vmem_cap, 128 << 20)

    margin = 4 << 20                           # Mosaic internal scratch / spill
    per_row = _per_row_vmem_bytes(h, w, c, x_item, hidden, n_pad)
    align = 16 if x_item < 4 else 8            # bf16 packs 16 rows per vreg

    if tb_override is None:
        budget = max(vmem_cap - resident_bytes - margin, 1 << 20)
        tb = max(1, budget // per_row)
        # Keep >=2 grid steps when the batch allows, so v7x's second TensorCore
        # gets work under dimension_semantics=("parallel",). No-op on v5e/v6e.
        if batch >= 4 * align:
            tb = min(tb, _round_up(pl.cdiv(batch, 2), align))
        if tb >= batch:
            tb = batch
        elif tb >= 128:
            tb = (tb // 128) * 128             # fill the MXU M dim, lane-dense
        else:
            tb = max(align, (tb // align) * align)
        tb = max(1, min(tb, batch))
    else:
        tb = int(tb_override)

    footprint = resident_bytes + tb * per_row + margin
    vmem_limit = int(min(vmem_cap, max(footprint, 32 << 20)))
    return tb, vmem_limit


def vssm_with_features_head(x_bb, features, params, *, tb_override=None):
    """x_bb: (B, H, W, 768) NHWC backbone output.  bf16 x_bb is the preferred
    fast path (the kernel is HBM-streaming-bound on x_bb, so f32 input roughly
    doubles its runtime).  features: (B, F).  Returns (B, num_classes) f32."""
    B, H, W, C = x_bb.shape
    assert C == params["c_img"]
    assert (H, W) == params["pool_hw"], "params prepared for a different pool size"
    f_extra = params["f_extra"]
    hidden, n_cls, n_pad = params["hidden"], params["n_cls"], params["n_pad"]
    assert features.shape == (B, f_extra)

    # torch.cat((pooled, features)) @ fc1.T == pooled @ w1_img + features @ w1_feat.
    # The feature term (+ fc1 bias) is a tiny (B,F)x(F,512) f32 matmul done here
    # and streamed into the kernel as a per-row bias.
    feat_bias = features.astype(jnp.float32) @ params["w1_feat"] + params["b1"]

    x_item = jnp.dtype(x_bb.dtype).itemsize
    resident = 2 * (params["w1_img"].size * params["w1_img"].dtype.itemsize
                    + params["w2"].size * params["w2"].dtype.itemsize
                    + params["b2"].size * 4)
    tb, vmem_limit = _tile_and_vmem_limit(B, H, W, C, x_item, hidden, n_pad,
                                          resident, tb_override)
    grid = (pl.cdiv(B, tb),)

    flops = B * (H * W * C                     # spatial reduce
                 + 2 * C * hidden              # fc1 (image part)
                 + 2 * hidden * n_pad)         # fc2
    bytes_accessed = (x_bb.size * x_item
                      + feat_bias.size * 4
                      + params["w1_img"].size * params["w1_img"].dtype.itemsize
                      + params["w2"].size * params["w2"].dtype.itemsize
                      + params["b2"].size * 4
                      + B * n_pad * 4)

    out = pl.pallas_call(
        _head_kernel,
        out_shape=jax.ShapeDtypeStruct((B, n_pad), jnp.float32),
        grid=grid,
        in_specs=[
            pl.BlockSpec((tb, H, W, C), lambda b: (b, 0, 0, 0)),   # streamed
            pl.BlockSpec((tb, hidden), lambda b: (b, 0)),          # streamed
            pl.BlockSpec((C, hidden), lambda b: (0, 0)),           # resident
            pl.BlockSpec((hidden, n_pad), lambda b: (0, 0)),       # resident
            pl.BlockSpec((1, n_pad), lambda b: (0, 0)),            # resident
        ],
        out_specs=pl.BlockSpec((tb, n_pad), lambda b: (b, 0)),     # lane-dense
        compiler_params=pltpu.CompilerParams(
            dimension_semantics=("parallel",),
            vmem_limit_bytes=vmem_limit),
        cost_estimate=pl.CostEstimate(
            flops=flops, transcendentals=0, bytes_accessed=bytes_accessed),
    )(x_bb, feat_bias, params["w1_img"], params["w2"], params["b2"])

    return out[:, :n_cls]


def _reference(x_bb, features, fc1_w, fc1_b, fc2_w, fc2_b):
    pooled = jnp.mean(x_bb.astype(jnp.float32), axis=(1, 2))       # (B, 768)
    cat = jnp.concatenate([pooled, features.astype(jnp.float32)], axis=1)
    h = jax.nn.relu(cat @ fc1_w.T + fc1_b)                         # (B, 512)
    return h @ fc2_w.T + fc2_b                                     # (B, num_classes)


if __name__ == "__main__":
    key = jax.random.PRNGKey(0)
    k_x, k_f, k_w1, k_b1, k_w2, k_b2 = jax.random.split(key, 6)

    B, H, W, C = 2, 8, 8, 768          # backbone output (small final-stage spatial)
    F_extra = 16                        # num_additional_features
    num_classes = 8

    x_bb = jax.random.normal(k_x, (B, H, W, C), dtype=jnp.float32)
    features = jax.random.normal(k_f, (B, F_extra), dtype=jnp.float32)

    # Deterministic parameter init (PyTorch nn.Linear layout: (out, in)).
    fc1_w = 0.02 * jax.random.normal(k_w1, (512, C + F_extra), jnp.float32)
    fc1_b = 0.01 * jax.random.normal(k_b1, (512,), jnp.float32)
    fc2_w = 0.02 * jax.random.normal(k_w2, (num_classes, 512), jnp.float32)
    fc2_b = 0.01 * jax.random.normal(k_b2, (num_classes,), jnp.float32)

    ref = _reference(x_bb, features, fc1_w, fc1_b, fc2_w, fc2_b)

    # 1) f32 compute path: exactness vs the PyTorch-equivalent math.
    params_f32 = prepare_head_params(fc1_w, fc1_b, fc2_w, fc2_b,
                                     pool_hw=(H, W), compute_dtype=jnp.float32)
    out_f32 = jax.block_until_ready(
        vssm_with_features_head(x_bb, features, params_f32))
    assert out_f32.shape == (B, num_classes)
    assert jnp.allclose(out_f32, ref, atol=2e-4, rtol=2e-4), "f32 mismatch"

    # 2) Default fast path: bf16 feature-map stream + bf16 MXU weights, f32 acc.
    params_bf16 = prepare_head_params(fc1_w, fc1_b, fc2_w, fc2_b, pool_hw=(H, W))
    x_bf16 = x_bb.astype(jnp.bfloat16)
    ref_bf16 = _reference(x_bf16, features, fc1_w, fc1_b, fc2_w, fc2_b)
    out_bf16 = jax.block_until_ready(
        vssm_with_features_head(x_bf16, features, params_bf16))
    assert out_bf16.shape == (B, num_classes)
    assert jnp.allclose(out_bf16, ref_bf16, atol=1e-2, rtol=5e-2), "bf16 mismatch"

    # 3) Non-divisible batch: the partial last grid block must be masked right.
    B2 = 24
    kx2, kf2 = jax.random.split(jax.random.PRNGKey(1), 2)
    x2 = jax.random.normal(kx2, (B2, H, W, C), jnp.float32).astype(jnp.bfloat16)
    f2 = jax.random.normal(kf2, (B2, F_extra), jnp.float32)
    ref2 = _reference(x2, f2, fc1_w, fc1_b, fc2_w, fc2_b)
    out2 = jax.block_until_ready(
        vssm_with_features_head(x2, f2, params_bf16, tb_override=16))
    assert out2.shape == (B2, num_classes)
    assert jnp.allclose(out2, ref2, atol=1e-2, rtol=5e-2), "partial-block mismatch"

    print("KERNEL_OK")
</pallas_src>

<mosaic_0001>
module attributes {stable_mosaic.version = 11 : i64} {
  func.func @_head_kernel(%arg0: i32, %arg1: memref<2x8x8x768xf32, #tpu.memory_space<vmem>>, %arg2: memref<2x512xf32, #tpu.memory_space<vmem>>, %arg3: memref<768x512xf32, #tpu.memory_space<vmem>>, %arg4: memref<512x128xf32, #tpu.memory_space<vmem>>, %arg5: memref<1x128xf32, #tpu.memory_space<vmem>>, %arg6: memref<2x128xf32, #tpu.memory_space<vmem>>) attributes {dimension_semantics = [#tpu.dimension_semantics<parallel>], iteration_bounds = array<i64: 1>, scalar_prefetch = 0 : i64, scratch_operands = 0 : i64, tpu.core_type = #tpu.core_type<tc>, window_params = [{transform_indices = @transform_0, window_bounds = array<i64: 2, 8, 8, 768>}, {transform_indices = @transform_1, window_bounds = array<i64: 2, 512>}, {pipeline_mode = #tpu.pipeline_mode<synchronous>, transform_indices = @transform_2, window_bounds = array<i64: 768, 512>}, {pipeline_mode = #tpu.pipeline_mode<synchronous>, transform_indices = @transform_3, window_bounds = array<i64: 512, 128>}, {pipeline_mode = #tpu.pipeline_mode<synchronous>, transform_indices = @transform_4, window_bounds = array<i64: 1, 128>}, {transform_indices = @transform_5, window_bounds = array<i64: 2, 128>}]} {
    %c0 = arith.constant 0 : index
    %c0_0 = arith.constant 0 : index
    %c0_1 = arith.constant 0 : index
    %c0_2 = arith.constant 0 : index
    %0 = vector.load %arg1[%c0, %c0_0, %c0_1, %c0_2] : memref<2x8x8x768xf32, #tpu.memory_space<vmem>>, vector<2x1x8x768xf32>
    %1 = vector.shape_cast %0 : vector<2x1x8x768xf32> to vector<2x8x768xf32>
    %c0_3 = arith.constant 0 : index
    %c1 = arith.constant 1 : index
    %c0_4 = arith.constant 0 : index
    %c0_5 = arith.constant 0 : index
    %2 = vector.load %arg1[%c0_3, %c1, %c0_4, %c0_5] : memref<2x8x8x768xf32, #tpu.memory_space<vmem>>, vector<2x1x8x768xf32>
    %3 = vector.shape_cast %2 : vector<2x1x8x768xf32> to vector<2x8x768xf32>
    %4 = arith.addf %1, %3 : vector<2x8x768xf32>
    %c0_6 = arith.constant 0 : index
    %c2 = arith.constant 2 : index
    %c0_7 = arith.constant 0 : index
    %c0_8 = arith.constant 0 : index
    %5 = vector.load %arg1[%c0_6, %c2, %c0_7, %c0_8] : memref<2x8x8x768xf32, #tpu.memory_space<vmem>>, vector<2x1x8x768xf32>
    %6 = vector.shape_cast %5 : vector<2x1x8x768xf32> to vector<2x8x768xf32>
    %7 = arith.addf %4, %6 : vector<2x8x768xf32>
    %c0_9 = arith.constant 0 : index
    %c3 = arith.constant 3 : index
    %c0_10 = arith.constant 0 : index
    %c0_11 = arith.constant 0 : index
    %8 = vector.load %arg1[%c0_9, %c3, %c0_10, %c0_11] : memref<2x8x8x768xf32, #tpu.memory_space<vmem>>, vector<2x1x8x768xf32>
    %9 = vector.shape_cast %8 : vector<2x1x8x768xf32> to vector<2x8x768xf32>
    %10 = arith.addf %7, %9 : vector<2x8x768xf32>
    %c0_12 = arith.constant 0 : index
    %c4 = arith.constant 4 : index
    %c0_13 = arith.constant 0 : index
    %c0_14 = arith.constant 0 : index
    %11 = vector.load %arg1[%c0_12, %c4, %c0_13, %c0_14] : memref<2x8x8x768xf32, #tpu.memory_space<vmem>>, vector<2x1x8x768xf32>
    %12 = vector.shape_cast %11 : vector<2x1x8x768xf32> to vector<2x8x768xf32>
    %13 = arith.addf %10, %12 : vector<2x8x768xf32>
    %c0_15 = arith.constant 0 : index
    %c5 = arith.constant 5 : index
    %c0_16 = arith.constant 0 : index
    %c0_17 = arith.constant 0 : index
    %14 = vector.load %arg1[%c0_15, %c5, %c0_16, %c0_17] : memref<2x8x8x768xf32, #tpu.memory_space<vmem>>, vector<2x1x8x768xf32>
    %15 = vector.shape_cast %14 : vector<2x1x8x768xf32> to vector<2x8x768xf32>
    %16 = arith.addf %13, %15 : vector<2x8x768xf32>
    %c0_18 = arith.constant 0 : index
    %c6 = arith.constant 6 : index
    %c0_19 = arith.constant 0 : index
    %c0_20 = arith.constant 0 : index
    %17 = vector.load %arg1[%c0_18, %c6, %c0_19, %c0_20] : memref<2x8x8x768xf32, #tpu.memory_space<vmem>>, vector<2x1x8x768xf32>
    %18 = vector.shape_cast %17 : vector<2x1x8x768xf32> to vector<2x8x768xf32>
    %19 = arith.addf %16, %18 : vector<2x8x768xf32>
    %c0_21 = arith.constant 0 : index
    %c7 = arith.constant 7 : index
    %c0_22 = arith.constant 0 : index
    %c0_23 = arith.constant 0 : index
    %20 = vector.load %arg1[%c0_21, %c7, %c0_22, %c0_23] : memref<2x8x8x768xf32, #tpu.memory_space<vmem>>, vector<2x1x8x768xf32>
    %21 = vector.shape_cast %20 : vector<2x1x8x768xf32> to vector<2x8x768xf32>
    %22 = arith.addf %19, %21 : vector<2x8x768xf32>
    %cst = arith.constant dense<0.000000e+00> : vector<2x768xf32>
    %23 = vector.multi_reduction <add>, %22, %cst [1] : vector<2x8x768xf32> to vector<2x768xf32>
    %c0_24 = arith.constant 0 : index
    %c0_25 = arith.constant 0 : index
    %24 = vector.load %arg3[%c0_24, %c0_25] : memref<768x512xf32, #tpu.memory_space<vmem>>, vector<768x512xf32>
    %cst_26 = arith.constant dense<0.000000e+00> : vector<2x512xf32>
    %25 = tpu.matmul %23, %24, %cst_26 {dimension_numbers = #tpu.dot_dimension_numbers<[1], [0], [0], [1], [0, 0, 1, 1], [], []>} : vector<2x768xf32>, vector<768x512xf32>, vector<2x512xf32> -> vector<2x512xf32>
    %c0_27 = arith.constant 0 : index
    %c0_28 = arith.constant 0 : index
    %26 = vector.load %arg2[%c0_27, %c0_28] : memref<2x512xf32, #tpu.memory_space<vmem>>, vector<2x512xf32>
    %27 = arith.addf %25, %26 : vector<2x512xf32>
    %cst_29 = arith.constant 0.000000e+00 : f32
    %28 = vector.broadcast %cst_29 : f32 to vector<2x512xf32>
    %29 = arith.maximumf %27, %28 : vector<2x512xf32>
    %c0_30 = arith.constant 0 : index
    %c0_31 = arith.constant 0 : index
    %30 = vector.load %arg4[%c0_30, %c0_31] : memref<512x128xf32, #tpu.memory_space<vmem>>, vector<512x128xf32>
    %cst_32 = arith.constant dense<0.000000e+00> : vector<2x128xf32>
    %31 = tpu.matmul %29, %30, %cst_32 {dimension_numbers = #tpu.dot_dimension_numbers<[1], [0], [0], [1], [0, 0, 1, 1], [], []>} : vector<2x512xf32>, vector<512x128xf32>, vector<2x128xf32> -> vector<2x128xf32>
    %c0_33 = arith.constant 0 : index
    %c0_34 = arith.constant 0 : index
    %32 = vector.load %arg5[%c0_33, %c0_34] : memref<1x128xf32, #tpu.memory_space<vmem>>, vector<1x128xf32>
    %33 = vector.broadcast %32 : vector<1x128xf32> to vector<2x128xf32>
    %34 = arith.addf %31, %33 : vector<2x128xf32>
    %c0_35 = arith.constant 0 : index
    %c0_36 = arith.constant 0 : index
    %35 = vector.load %arg6[%c0_35, %c0_36] : memref<2x128xf32, #tpu.memory_space<vmem>>, vector<2x128xf32>
    tpu.vector_store %arg6[%c0_35, %c0_36], %34 {strides = array<i32>} : memref<2x128xf32, #tpu.memory_space<vmem>>, vector<2x128xf32>,
    return
  }
  func.func @transform_0(%arg0: i32) -> (i32, i32, i32, i32) {
    %c0_i32 = arith.constant 0 : i32
    %c0_i32_0 = arith.constant 0 : i32
    %c0_i32_1 = arith.constant 0 : i32
    %c0_i32_2 = arith.constant 0 : i32
    return %arg0, %c0_i32, %c0_i32_0, %c0_i32_1 : i32, i32, i32, i32
  }
  func.func @transform_1(%arg0: i32) -> (i32, i32) {
    %c0_i32 = arith.constant 0 : i32
    %c0_i32_0 = arith.constant 0 : i32
    return %arg0, %c0_i32 : i32, i32
  }
  func.func @transform_2(%arg0: i32) -> (i32, i32) {
    %c0_i32 = arith.constant 0 : i32
    %c0_i32_0 = arith.constant 0 : i32
    %c0_i32_1 = arith.constant 0 : i32
    return %c0_i32, %c0_i32_0 : i32, i32
  }
  func.func @transform_3(%arg0: i32) -> (i32, i32) {
    %c0_i32 = arith.constant 0 : i32
    %c0_i32_0 = arith.constant 0 : i32
    %c0_i32_1 = arith.constant 0 : i32
    return %c0_i32, %c0_i32_0 : i32, i32
  }
  func.func @transform_4(%arg0: i32) -> (i32, i32) {
    %c0_i32 = arith.constant 0 : i32
    %c0_i32_0 = arith.constant 0 : i32
    %c0_i32_1 = arith.constant 0 : i32
    return %c0_i32, %c0_i32_0 : i32, i32
  }
  func.func @transform_5(%arg0: i32) -> (i32, i32) {
    %c0_i32 = arith.constant 0 : i32
    %c0_i32_0 = arith.constant 0 : i32
    return %arg0, %c0_i32 : i32, i32
  }
}

</mosaic_0001>

<llo_original>
// kernel: tpu_custom_call.1
$region0: #{tpu_custom_call.1}
  #allocation0 [shape = 'u32[]', space=smem, size = 0x4, offset = 0x4, fixed_abs, tag = 'smem constant byte address 0x4 - core index']
  #allocation1 [shape = 'u32[144,128]{1,0:T(1,128)}', space=vmem, size = 0x12000, scoped, tag = 'internal scratch']
  %s0 = inlined_call_operand.hbm [shape: f32[2,8,8,768], index: 0, kind: input, shape index: {}]
  %s1 = inlined_call_operand.hbm [shape: f32[2,512], index: 1, kind: input, shape index: {}]
  %s2 = inlined_call_operand.hbm [shape: f32[768,512], index: 2, kind: input, shape index: {}]
  %s3 = inlined_call_operand.hbm [shape: f32[512,128], index: 3, kind: input, shape index: {}]
  %s4 = inlined_call_operand.hbm [shape: f32[1,128], index: 4, kind: input, shape index: {}]
  %s5 = inlined_call_operand.hbm [shape: f32[2,128], index: 5, kind: output, shape index: {}]
  %s6 = sld [smem:[#allocation0]]
  $region50: #{tpu_custom_call.1} parent=0
    _
  %s8 = ssub.s32 1, %s6
  %s9 = scalar_select 0, %s8, %s6
  $region1: #{tpu_custom_call.1} parent=0
    #allocation2 [shape = 'u8[393216]{0}', space=vmem, size = 0x60000, scoped, tag = 'input window, operand 0, single buffered']
    #allocation3 [shape = 's32[1]{0}', space=sflag, size = 0x4, scoped, tag = 'scoped memory for tpu_custom_call.1']
    #allocation4 [shape = 's32[1]{0}', space=sflag, size = 0x4, scoped, tag = 'scoped memory for tpu_custom_call.1']
    #allocation5 [shape = 'u8[4096]{0}', space=vmem, size = 0x1000, scoped, tag = 'input window, operand 1, single buffered']
    #allocation6 [shape = 's32[1]{0}', space=sflag, size = 0x4, scoped, tag = 'scoped memory for tpu_custom_call.1']
    #allocation7 [shape = 'u8[1572864]{0}', space=vmem, size = 0x180000, scoped, tag = 'input window, operand 2, single buffered']
    #allocation8 [shape = 'u8[262144]{0}', space=vmem, size = 0x40000, scoped, tag = 'input window, operand 3, single buffered']
    #allocation9 [shape = 's32[1]{0}', space=sflag, size = 0x4, scoped, tag = 'scoped memory for tpu_custom_call.1']
    #allocation10 [shape = 'u8[512]{0}', space=vmem, size = 0x400, scoped, tag = 'input window, operand 4, single buffered']
    #allocation11 [shape = 'u8[1024]{0}', space=vmem, size = 0x400, scoped, tag = 'output window, operand 0, single buffered']
    %10 = vsyncpa [#allocation3], 0
    %11 = vsyncpa [#allocation6], 0
    %12 = vsyncpa [#allocation9], 0
    %13 = vsyncpa [#allocation4], 0
    // Predicated region
    $region2: #{tpu_custom_call.1} parent=1 // pred_check
      _
    $region3: #{tpu_custom_call.1} parent=1 // pred_check_branch
      %15 = sbr.rel (0) target = $region5
    $region4: #{tpu_custom_call.1} parent=1 // pred_region
      %s17 = ssub.s32 12288, 12288
      %18 = vsyncadd [#allocation3], %s17
      %s19 = sshll.u32 [#allocation2], 4
      %s20 = int_to_ptr.vmem [resolvable:$true] %s19
      %25 = dma.hbm_to_vmem [thread:$0]  %s0, 12288, %s20, [#allocation3], 768, 768, 48
    $region5: #{tpu_custom_call.1} parent=1 // pred_fallthru
      _
    // Predicated region
    $region6: #{tpu_custom_call.1} parent=1 // pred_check
      _
    $region7: #{tpu_custom_call.1} parent=1 // pred_check_branch
      %27 = sbr.rel (0) target = $region9
    $region8: #{tpu_custom_call.1} parent=1 // pred_region
      %s29 = ssub.s32 128, 128
      %30 = vsyncadd [#allocation6], %s29
      %s32 = sshll.u32 [#allocation5], 4
      %s33 = int_to_ptr.vmem [resolvable:$true] %s32
      %35 = dma.hbm_to_vmem [thread:$0]  %s1, 128, %s33, [#allocation6]
    $region9: #{tpu_custom_call.1} parent=1 // pred_fallthru
      _
    // Predicated region
    $region10: #{tpu_custom_call.1} parent=1 // pred_check
      _
    $region11: #{tpu_custom_call.1} parent=1 // pred_check_branch
      %37 = sbr.rel (0) target = $region13
    $region12: #{tpu_custom_call.1} parent=1 // pred_region
      %s39 = ssub.s32 49152, 49152
      %40 = vsyncadd [#allocation6], %s39
      %s41 = sshll.u32 [#allocation7], 4
      %s42 = int_to_ptr.vmem [resolvable:$true] %s41
      %47 = dma.hbm_to_vmem [thread:$0]  %s2, 49152, %s42, [#allocation6], 512, 512, 32
    $region13: #{tpu_custom_call.1} parent=1 // pred_fallthru
      _
    // Predicated region
    $region14: #{tpu_custom_call.1} parent=1 // pred_check
      _
    $region15: #{tpu_custom_call.1} parent=1 // pred_check_branch
      %49 = sbr.rel (0) target = $region17
    $region16: #{tpu_custom_call.1} parent=1 // pred_region
      %s51 = ssub.s32 8192, 8192
      %52 = vsyncadd [#allocation9], %s51
      %s53 = sshll.u32 [#allocation8], 4
      %s54 = int_to_ptr.vmem [resolvable:$true] %s53
      %59 = dma.hbm_to_vmem [thread:$0]  %s3, 8192, %s54, [#allocation9], 128, 128, 8
    $region17: #{tpu_custom_call.1} parent=1 // pred_fallthru
      _
    // Predicated region
    $region18: #{tpu_custom_call.1} parent=1 // pred_check
      _
    $region19: #{tpu_custom_call.1} parent=1 // pred_check_branch
      %61 = sbr.rel (0) target = $region21
    $region20: #{tpu_custom_call.1} parent=1 // pred_region
      %s63 = ssub.s32 16, 16
      %64 = vsyncadd [#allocation9], %s63
      %s66 = sshll.u32 [#allocation10], 4
      %s67 = int_to_ptr.vmem [resolvable:$true] %s66
      %69 = dma.hbm_to_vmem [thread:$0]  %s4, 16, %s67, [#allocation9]
    $region21: #{tpu_custom_call.1} parent=1 // pred_fallthru
      _
    // Predicated region
    $region22: #{tpu_custom_call.1} parent=1 // pred_check
      _
    $region23: #{tpu_custom_call.1} parent=1 // pred_check_branch
      %71 = sbr.rel (0) target = $region25
    $region24: #{tpu_custom_call.1} parent=1 // pred_region
      %72 = dma.done [#allocation3], 12288
    $region25: #{tpu_custom_call.1} parent=1 // pred_fallthru
      _
    // Predicated region
    $region26: #{tpu_custom_call.1} parent=1 // pred_check
      _
    $region27: #{tpu_custom_call.1} parent=1 // pred_check_branch
      %74 = sbr.rel (0) target = $region29
    $region28: #{tpu_custom_call.1} parent=1 // pred_region
      %75 = dma.done [#allocation6], 128
    $region29: #{tpu_custom_call.1} parent=1 // pred_fallthru
      _
    // Predicated region
    $region30: #{tpu_custom_call.1} parent=1 // pred_check
      _
    $region31: #{tpu_custom_call.1} parent=1 // pred_check_branch
      %77 = sbr.rel (0) target = $region33
    $region32: #{tpu_custom_call.1} parent=1 // pred_region
      %78 = dma.done [#allocation6], 49152
    $region33: #{tpu_custom_call.1} parent=1 // pred_fallthru
      _
    // Predicated region
    $region34: #{tpu_custom_call.1} parent=1 // pred_check
      _
    $region35: #{tpu_custom_call.1} parent=1 // pred_check_branch
      %80 = sbr.rel (0) target = $region37
    $region36: #{tpu_custom_call.1} parent=1 // pred_region
      %81 = dma.done [#allocation9], 8192
    $region37: #{tpu_custom_call.1} parent=1 // pred_fallthru
      _
    // Predicated region
    $region38: #{tpu_custom_call.1} parent=1 // pred_check
      _
    $region39: #{tpu_custom_call.1} parent=1 // pred_check_branch
      %83 = sbr.rel (0) target = $region41
    $region40: #{tpu_custom_call.1} parent=1 // pred_region
      %84 = dma.done [#allocation9], 16
    $region41: #{tpu_custom_call.1} parent=1 // pred_fallthru
      _
    %v85 = vld [vmem:[#allocation2] sm:$0xff]
    %v86 = vld [vmem:[#allocation2 + $0x8] sm:$0xff]
    %v87 = vld [vmem:[#allocation2 + $0x10] sm:$0xff]
    %v88 = vld [vmem:[#allocation2 + $0x18] sm:$0xff]
    %v89 = vld [vmem:[#allocation2 + $0x20] sm:$0xff]
    %v90 = vld [vmem:[#allocation2 + $0x28] sm:$0xff]
    %v91 = vld [vmem:[#allocation2 + $0x180] sm:$0xff]
    %v92 = vld [vmem:[#allocation2 + $0x188] sm:$0xff]
    %v93 = vld [vmem:[#allocation2 + $0x190] sm:$0xff]
    %v94 = vld [vmem:[#allocation2 + $0x198] sm:$0xff]
    %v95 = vld [vmem:[#allocation2 + $0x1a0] sm:$0xff]
    %v96 = vld [vmem:[#allocation2 + $0x1a8] sm:$0xff]
    %s97 = scalar_lea.vmem [#allocation2], 48
    %v98 = vld [vmem:[%s97] sm:$0xff]
    %v99 = vld [vmem:[%s97 + $0x8] sm:$0xff]
    %v100 = vld [vmem:[%s97 + $0x10] sm:$0xff]
    %v101 = vld [vmem:[%s97 + $0x18] sm:$0xff]
    %v102 = vld [vmem:[%s97 + $0x20] sm:$0xff]
    %v103 = vld [vmem:[%s97 + $0x28] sm:$0xff]
    %v104 = vld [vmem:[%s97 + $0x180] sm:$0xff]
    %v105 = vld [vmem:[%s97 + $0x188] sm:$0xff]
    %v106 = vld [vmem:[%s97 + $0x190] sm:$0xff]
    %v107 = vld [vmem:[%s97 + $0x198] sm:$0xff]
    %v108 = vld [vmem:[%s97 + $0x1a0] sm:$0xff]
    %v109 = vld [vmem:[%s97 + $0x1a8] sm:$0xff]
    %v110 = vadd.f32 %v85, %v98
    %v111 = vadd.f32 %v86, %v99
    %v112 = vadd.f32 %v87, %v100
    %v113 = vadd.f32 %v88, %v101
    %v114 = vadd.f32 %v89, %v102
    %v115 = vadd.f32 %v90, %v103
    %v116 = vadd.f32 %v91, %v104
    %v117 = vadd.f32 %v92, %v105
    %v118 = vadd.f32 %v93, %v106
    %v119 = vadd.f32 %v94, %v107
    %v120 = vadd.f32 %v95, %v108
    %v121 = vadd.f32 %v96, %v109
    %s122 = scalar_lea.vmem [#allocation2], 96
    %v123 = vld [vmem:[%s122] sm:$0xff]
    %v124 = vld [vmem:[%s122 + $0x8] sm:$0xff]
    %v125 = vld [vmem:[%s122 + $0x10] sm:$0xff]
    %v126 = vld [vmem:[%s122 + $0x18] sm:$0xff]
    %v127 = vld [vmem:[%s122 + $0x20] sm:$0xff]
    %v128 = vld [vmem:[%s122 + $0x28] sm:$0xff]
    %v129 = vld [vmem:[%s122 + $0x180] sm:$0xff]
    %v130 = vld [vmem:[%s122 + $0x188] sm:$0xff]
    %v131 = vld [vmem:[%s122 + $0x190] sm:$0xff]
    %v132 = vld [vmem:[%s122 + $0x198] sm:$0xff]
    %v133 = vld [vmem:[%s122 + $0x1a0] sm:$0xff]
    %v134 = vld [vmem:[%s122 + $0x1a8] sm:$0xff]
    %v135 = vadd.f32 %v110, %v123
    %v136 = vadd.f32 %v111, %v124
    %v137 = vadd.f32 %v112, %v125
    %v138 = vadd.f32 %v113, %v126
    %v139 = vadd.f32 %v114, %v127
    %v140 = vadd.f32 %v115, %v128
    %v141 = vadd.f32 %v116, %v129
    %v142 = vadd.f32 %v117, %v130
    %v143 = vadd.f32 %v118, %v131
    %v144 = vadd.f32 %v119, %v132
    %v145 = vadd.f32 %v120, %v133
    %v146 = vadd.f32 %v121, %v134
    %s147 = scalar_lea.vmem [#allocation2], 144
    %v148 = vld [vmem:[%s147] sm:$0xff]
    %v149 = vld [vmem:[%s147 + $0x8] sm:$0xff]
    %v150 = vld [vmem:[%s147 + $0x10] sm:$0xff]
    %v151 = vld [vmem:[%s147 + $0x18] sm:$0xff]
    %v152 = vld [vmem:[%s147 + $0x20] sm:$0xff]
    %v153 = vld [vmem:[%s147 + $0x28] sm:$0xff]
    %v154 = vld [vmem:[%s147 + $0x180] sm:$0xff]
    %v155 = vld [vmem:[%s147 + $0x188] sm:$0xff]
    %v156 = vld [vmem:[%s147 + $0x190] sm:$0xff]
    %v157 = vld [vmem:[%s147 + $0x198] sm:$0xff]
    %v158 = vld [vmem:[%s147 + $0x1a0] sm:$0xff]
    %v159 = vld [vmem:[%s147 + $0x1a8] sm:$0xff]
    %v160 = vadd.f32 %v135, %v148
    %v161 = vadd.f32 %v136, %v149
    %v162 = vadd.f32 %v137, %v150
    %v163 = vadd.f32 %v138, %v151
    %v164 = vadd.f32 %v139, %v152
    %v165 = vadd.f32 %v140, %v153
    %v166 = vadd.f32 %v141, %v154
    %v167 = vadd.f32 %v142, %v155
    %v168 = vadd.f32 %v143, %v156
    %v169 = vadd.f32 %v144, %v157
    %v170 = vadd.f32 %v145, %v158
    %v171 = vadd.f32 %v146, %v159
    %s172 = scalar_lea.vmem [#allocation2], 192
    %v173 = vld [vmem:[%s172] sm:$0xff]
    %v174 = vld [vmem:[%s172 + $0x8] sm:$0xff]
    %v175 = vld [vmem:[%s172 + $0x10] sm:$0xff]
    %v176 = vld [vmem:[%s172 + $0x18] sm:$0xff]
    %v177 = vld [vmem:[%s172 + $0x20] sm:$0xff]
    %v178 = vld [vmem:[%s172 + $0x28] sm:$0xff]
    %v179 = vld [vmem:[%s172 + $0x180] sm:$0xff]
    %v180 = vld [vmem:[%s172 + $0x188] sm:$0xff]
    %v181 = vld [vmem:[%s172 + $0x190] sm:$0xff]
    %v182 = vld [vmem:[%s172 + $0x198] sm:$0xff]
    %v183 = vld [vmem:[%s172 + $0x1a0] sm:$0xff]
    %v184 = vld [vmem:[%s172 + $0x1a8] sm:$0xff]
    %v185 = vadd.f32 %v160, %v173
    %v186 = vadd.f32 %v161, %v174
    %v187 = vadd.f32 %v162, %v175
    %v188 = vadd.f32 %v163, %v176
    %v189 = vadd.f32 %v164, %v177
    %v190 = vadd.f32 %v165, %v178
    %v191 = vadd.f32 %v166, %v179
    %v192 = vadd.f32 %v167, %v180
    %v193 = vadd.f32 %v168, %v181
    %v194 = vadd.f32 %v169, %v182
    %v195 = vadd.f32 %v170, %v183
    %v196 = vadd.f32 %v171, %v184
    %s197 = scalar_lea.vmem [#allocation2], 240
    %v198 = vld [vmem:[%s197] sm:$0xff]
    %v199 = vld [vmem:[%s197 + $0x8] sm:$0xff]
    %v200 = vld [vmem:[%s197 + $0x10] sm:$0xff]
    %v201 = vld [vmem:[%s197 + $0x18] sm:$0xff]
    %v202 = vld [vmem:[%s197 + $0x20] sm:$0xff]
    %v203 = vld [vmem:[%s197 + $0x28] sm:$0xff]
    %v204 = vld [vmem:[%s197 + $0x180] sm:$0xff]
    %v205 = vld [vmem:[%s197 + $0x188] sm:$0xff]
    %v206 = vld [vmem:[%s197 + $0x190] sm:$0xff]
    %v207 = vld [vmem:[%s197 + $0x198] sm:$0xff]
    %v208 = vld [vmem:[%s197 + $0x1a0] sm:$0xff]
    %v209 = vld [vmem:[%s197 + $0x1a8] sm:$0xff]
    %v210 = vadd.f32 %v185, %v198
    %v211 = vadd.f32 %v186, %v199
    %v212 = vadd.f32 %v187, %v200
    %v213 = vadd.f32 %v188, %v201
    %v214 = vadd.f32 %v189, %v202
    %v215 = vadd.f32 %v190, %v203
    %v216 = vadd.f32 %v191, %v204
    %v217 = vadd.f32 %v192, %v205
    %v218 = vadd.f32 %v193, %v206
    %v219 = vadd.f32 %v194, %v207
    %v220 = vadd.f32 %v195, %v208
    %v221 = vadd.f32 %v196, %v209
    %s222 = scalar_lea.vmem [#allocation2], 288
    %v223 = vld [vmem:[%s222] sm:$0xff]
    %v224 = vld [vmem:[%s222 + $0x8] sm:$0xff]
    %v225 = vld [vmem:[%s222 + $0x10] sm:$0xff]
    %v226 = vld [vmem:[%s222 + $0x18] sm:$0xff]
    %v227 = vld [vmem:[%s222 + $0x20] sm:$0xff]
    %v228 = vld [vmem:[%s222 + $0x28] sm:$0xff]
    %v229 = vld [vmem:[%s222 + $0x180] sm:$0xff]
    %v230 = vld [vmem:[%s222 + $0x188] sm:$0xff]
    %v231 = vld [vmem:[%s222 + $0x190] sm:$0xff]
    %v232 = vld [vmem:[%s222 + $0x198] sm:$0xff]
    %v233 = vld [vmem:[%s222 + $0x1a0] sm:$0xff]
    %v234 = vld [vmem:[%s222 + $0x1a8] sm:$0xff]
    %v235 = vadd.f32 %v210, %v223
    %v236 = vadd.f32 %v211, %v224
    %v237 = vadd.f32 %v212, %v225
    %v238 = vadd.f32 %v213, %v226
    %v239 = vadd.f32 %v214, %v227
    %v240 = vadd.f32 %v215, %v228
    %v241 = vadd.f32 %v216, %v229
    %v242 = vadd.f32 %v217, %v230
    %v243 = vadd.f32 %v218, %v231
    %v244 = vadd.f32 %v219, %v232
    %v245 = vadd.f32 %v220, %v233
    %v246 = vadd.f32 %v221, %v234
    %s247 = scalar_lea.vmem [#allocation2], 336
    %v248 = vld [vmem:[%s247] sm:$0xff]
    %v249 = vld [vmem:[%s247 + $0x8] sm:$0xff]
    %v250 = vld [vmem:[%s247 + $0x10] sm:$0xff]
    %v251 = vld [vmem:[%s247 + $0x18] sm:$0xff]
    %v252 = vld [vmem:[%s247 + $0x20] sm:$0xff]
    %v253 = vld [vmem:[%s247 + $0x28] sm:$0xff]
    %v254 = vld [vmem:[%s247 + $0x180] sm:$0xff]
    %v255 = vld [vmem:[%s247 + $0x188] sm:$0xff]
    %v256 = vld [vmem:[%s247 + $0x190] sm:$0xff]
    %v257 = vld [vmem:[%s247 + $0x198] sm:$0xff]
    %v258 = vld [vmem:[%s247 + $0x1a0] sm:$0xff]
    %v259 = vld [vmem:[%s247 + $0x1a8] sm:$0xff]
    %v260 = vadd.f32 %v235, %v248
    %v261 = vadd.f32 %v236, %v249
    %v262 = vadd.f32 %v237, %v250
    %v263 = vadd.f32 %v238, %v251
    %v264 = vadd.f32 %v239, %v252
    %v265 = vadd.f32 %v240, %v253
    %v266 = vadd.f32 %v241, %v254
    %v267 = vadd.f32 %v242, %v255
    %v268 = vadd.f32 %v243, %v256
    %v269 = vadd.f32 %v244, %v257
    %v270 = vadd.f32 %v245, %v258
    %v271 = vadd.f32 %v246, %v259
    %v272 = vrot.slane %v260, 4
    %v273 = vadd.f32 %v260, %v272
    %v274 = vrot.slane %v273, 2
    %v275 = vadd.f32 %v273, %v274
    %v276 = vrot.slane %v275, 1
    %v277 = vadd.f32 %v275, %v276
    %v278 = vrot.slane %v261, 4
    %v279 = vadd.f32 %v261, %v278
    %v280 = vrot.slane %v279, 2
    %v281 = vadd.f32 %v279, %v280
    %v282 = vrot.slane %v281, 1
    %v283 = vadd.f32 %v281, %v282
    %v284 = vrot.slane %v262, 4
    %v285 = vadd.f32 %v262, %v284
    %v286 = vrot.slane %v285, 2
    %v287 = vadd.f32 %v285, %v286
    %v288 = vrot.slane %v287, 1
    %v289 = vadd.f32 %v287, %v288
    %v290 = vrot.slane %v263, 4
    %v291 = vadd.f32 %v263, %v290
    %v292 = vrot.slane %v291, 2
    %v293 = vadd.f32 %v291, %v292
    %v294 = vrot.slane %v293, 1
    %v295 = vadd.f32 %v293, %v294
    %v296 = vrot.slane %v264, 4
    %v297 = vadd.f32 %v264, %v296
    %v298 = vrot.slane %v297, 2
    %v299 = vadd.f32 %v297, %v298
    %v300 = vrot.slane %v299, 1
    %v301 = vadd.f32 %v299, %v300
    %v302 = vrot.slane %v265, 4
    %v303 = vadd.f32 %v265, %v302
    %v304 = vrot.slane %v303, 2
    %v305 = vadd.f32 %v303, %v304
    %v306 = vrot.slane %v305, 1
    %v307 = vadd.f32 %v305, %v306
    %v308 = vrot.slane %v266, 4
    %v309 = vadd.f32 %v266, %v308
    %v310 = vrot.slane %v309, 2
    %v311 = vadd.f32 %v309, %v310
    %v312 = vrot.slane %v311, 1
    %v313 = vadd.f32 %v311, %v312
    %v314 = vrot.slane %v267, 4
    %v315 = vadd.f32 %v267, %v314
    %v316 = vrot.slane %v315, 2
    %v317 = vadd.f32 %v315, %v316
    %v318 = vrot.slane %v317, 1
    %v319 = vadd.f32 %v317, %v318
    %v320 = vrot.slane %v268, 4
    %v321 = vadd.f32 %v268, %v320
    %v322 = vrot.slane %v321, 2
    %v323 = vadd.f32 %v321, %v322
    %v324 = vrot.slane %v323, 1
    %v325 = vadd.f32 %v323, %v324
    %v326 = vrot.slane %v269, 4
    %v327 = vadd.f32 %v269, %v326
    %v328 = vrot.slane %v327, 2
    %v329 = vadd.f32 %v327, %v328
    %v330 = vrot.slane %v329, 1
    %v331 = vadd.f32 %v329, %v330
    %v332 = vrot.slane %v270, 4
    %v333 = vadd.f32 %v270, %v332
    %v334 = vrot.slane %v333, 2
    %v335 = vadd.f32 %v333, %v334
    %v336 = vrot.slane %v335, 1
    %v337 = vadd.f32 %v335, %v336
    %v338 = vrot.slane %v271, 4
    %v339 = vadd.f32 %v271, %v338
    %v340 = vrot.slane %v339, 2
    %v341 = vadd.f32 %v339, %v340
    %v342 = vrot.slane %v341, 1
    %v343 = vadd.f32 %v341, %v342
    %v344 = vld [vmem:[#allocation7] sm:$0xff]
    %v345 = vld [vmem:[#allocation7 + $0x8] sm:$0xff]
    %v346 = vld [vmem:[#allocation7 + $0x10] sm:$0xff]
    %v347 = vld [vmem:[#allocation7 + $0x18] sm:$0xff]
    %v348 = vld [vmem:[#allocation7 + $0x20] sm:$0xff]
    %v349 = vld [vmem:[#allocation7 + $0x28] sm:$0xff]
    %v350 = vld [vmem:[#allocation7 + $0x30] sm:$0xff]
    %v351 = vld [vmem:[#allocation7 + $0x38] sm:$0xff]
    %v352 = vld [vmem:[#allocation7 + $0x40] sm:$0xff]
    %v353 = vld [vmem:[#allocation7 + $0x48] sm:$0xff]
    %v354 = vld [vmem:[#allocation7 + $0x50] sm:$0xff]
    %v355 = vld [vmem:[#allocation7 + $0x58] sm:$0xff]
    %v356 = vld [vmem:[#allocation7 + $0x60] sm:$0xff]
    %v357 = vld [vmem:[#allocation7 + $0x68] sm:$0xff]
    %v358 = vld [vmem:[#allocation7 + $0x70] sm:$0xff]
    %v359 = vld [vmem:[#allocation7 + $0x78] sm:$0xff]
    %v360 = vld [vmem:[#allocation7 + $0x80] sm:$0xff]
    %v361 = vld [vmem:[#allocation7 + $0x88] sm:$0xff]
    %v362 = vld [vmem:[#allocation7 + $0x90] sm:$0xff]
    %v363 = vld [vmem:[#allocation7 + $0x98] sm:$0xff]
    %v364 = vld [vmem:[#allocation7 + $0xa0] sm:$0xff]
    %v365 = vld [vmem:[#allocation7 + $0xa8] sm:$0xff]
    %v366 = vld [vmem:[#allocation7 + $0xb0] sm:$0xff]
    %v367 = vld [vmem:[#allocation7 + $0xb8] sm:$0xff]
    %v368 = vld [vmem:[#allocation7 + $0xc0] sm:$0xff]
    %v369 = vld [vmem:[#allocation7 + $0xc8] sm:$0xff]
    %v370 = vld [vmem:[#allocation7 + $0xd0] sm:$0xff]
    %v371 = vld [vmem:[#allocation7 + $0xd8] sm:$0xff]
    %v372 = vld [vmem:[#allocation7 + $0xe0] sm:$0xff]
    %v373 = vld [vmem:[#allocation7 + $0xe8] sm:$0xff]
    %v374 = vld [vmem:[#allocation7 + $0xf0] sm:$0xff]
    %v375 = vld [vmem:[#allocation7 + $0xf8] sm:$0xff]
    %v376 = vld [vmem:[#allocation7 + $0x100] sm:$0xff]
    %v377 = vld [vmem:[#allocation7 + $0x108] sm:$0xff]
    %v378 = vld [vmem:[#allocation7 + $0x110] sm:$0xff]
    %v379 = vld [vmem:[#allocation7 + $0x118] sm:$0xff]
    %v380 = vld [vmem:[#allocation7 + $0x120] sm:$0xff]
    %v381 = vld [vmem:[#allocation7 + $0x128] sm:$0xff]
    %v382 = vld [vmem:[#allocation7 + $0x130] sm:$0xff]
    %v383 = vld [vmem:[#allocation7 + $0x138] sm:$0xff]
    %v384 = vld [vmem:[#allocation7 + $0x140] sm:$0xff]
    %v385 = vld [vmem:[#allocation7 + $0x148] sm:$0xff]
    %v386 = vld [vmem:[#allocation7 + $0x150] sm:$0xff]
    %v387 = vld [vmem:[#allocation7 + $0x158] sm:$0xff]
    %v388 = vld [vmem:[#allocation7 + $0x160] sm:$0xff]
    %v389 = vld [vmem:[#allocation7 + $0x168] sm:$0xff]
    %v390 = vld [vmem:[#allocation7 + $0x170] sm:$0xff]
    %v391 = vld [vmem:[#allocation7 + $0x178] sm:$0xff]
    %v392 = vld [vmem:[#allocation7 + $0x180] sm:$0xff]
    %v393 = vld [vmem:[#allocation7 + $0x188] sm:$0xff]
    %v394 = vld [vmem:[#allocation7 + $0x190] sm:$0xff]
    %v395 = vld [vmem:[#allocation7 + $0x198] sm:$0xff]
    %v396 = vld [vmem:[#allocation7 + $0x1a0] sm:$0xff]
    %v397 = vld [vmem:[#allocation7 + $0x1a8] sm:$0xff]
    %v398 = vld [vmem:[#allocation7 + $0x1b0] sm:$0xff]
    %v399 = vld [vmem:[#allocation7 + $0x1b8] sm:$0xff]
    %v400 = vld [vmem:[#allocation7 + $0x1c0] sm:$0xff]
    %v401 = vld [vmem:[#allocation7 + $0x1c8] sm:$0xff]
    %v402 = vld [vmem:[#allocation7 + $0x1d0] sm:$0xff]
    %v403 = vld [vmem:[#allocation7 + $0x1d8] sm:$0xff]
    %v404 = vld [vmem:[#allocation7 + $0x1e0] sm:$0xff]
    %v405 = vld [vmem:[#allocation7 + $0x1e8] sm:$0xff]
    %v406 = vld [vmem:[#allocation7 + $0x1f0] sm:$0xff]
    %v407 = vld [vmem:[#allocation7 + $0x1f8] sm:$0xff]
    %v408 = vld [vmem:[#allocation7 + $0x200] sm:$0xff]
    %v409 = vld [vmem:[#allocation7 + $0x208] sm:$0xff]
    %v410 = vld [vmem:[#allocation7 + $0x210] sm:$0xff]
    %v411 = vld [vmem:[#allocation7 + $0x218] sm:$0xff]
    %v412 = vld [vmem:[#allocation7 + $0x220] sm:$0xff]
    %v413 = vld [vmem:[#allocation7 + $0x228] sm:$0xff]
    %v414 = vld [vmem:[#allocation7 + $0x230] sm:$0xff]
    %v415 = vld [vmem:[#allocation7 + $0x238] sm:$0xff]
    %v416 = vld [vmem:[#allocation7 + $0x240] sm:$0xff]
    %v417 = vld [vmem:[#allocation7 + $0x248] sm:$0xff]
    %v418 = vld [vmem:[#allocation7 + $0x250] sm:$0xff]
    %v419 = vld [vmem:[#allocation7 + $0x258] sm:$0xff]
    %v420 = vld [vmem:[#allocation7 + $0x260] sm:$0xff]
    %v421 = vld [vmem:[#allocation7 + $0x268] sm:$0xff]
    %v422 = vld [vmem:[#allocation7 + $0x270] sm:$0xff]
    %v423 = vld [vmem:[#allocation7 + $0x278] sm:$0xff]
    %v424 = vld [vmem:[#allocation7 + $0x280] sm:$0xff]
    %v425 = vld [vmem:[#allocation7 + $0x288] sm:$0xff]
    %v426 = vld [vmem:[#allocation7 + $0x290] sm:$0xff]
    %v427 = vld [vmem:[#allocation7 + $0x298] sm:$0xff]
    %v428 = vld [vmem:[#allocation7 + $0x2a0] sm:$0xff]
    %v429 = vld [vmem:[#allocation7 + $0x2a8] sm:$0xff]
    %v430 = vld [vmem:[#allocation7 + $0x2b0] sm:$0xff]
    %v431 = vld [vmem:[#allocation7 + $0x2b8] sm:$0xff]
    %v432 = vld [vmem:[#allocation7 + $0x2c0] sm:$0xff]
    %v433 = vld [vmem:[#allocation7 + $0x2c8] sm:$0xff]
    %v434 = vld [vmem:[#allocation7 + $0x2d0] sm:$0xff]
    %v435 = vld [vmem:[#allocation7 + $0x2d8] sm:$0xff]
    %v436 = vld [vmem:[#allocation7 + $0x2e0] sm:$0xff]
    %v437 = vld [vmem:[#allocation7 + $0x2e8] sm:$0xff]
    %v438 = vld [vmem:[#allocation7 + $0x2f0] sm:$0xff]
    %v439 = vld [vmem:[#allocation7 + $0x2f8] sm:$0xff]
    %v440 = vld [vmem:[#allocation7 + $0x300] sm:$0xff]
    %v441 = vld [vmem:[#allocation7 + $0x308] sm:$0xff]
    %v442 = vld [vmem:[#allocation7 + $0x310] sm:$0xff]
    %v443 = vld [vmem:[#allocation7 + $0x318] sm:$0xff]
    %v444 = vld [vmem:[#allocation7 + $0x320] sm:$0xff]
    %v445 = vld [vmem:[#allocation7 + $0x328] sm:$0xff]
    %v446 = vld [vmem:[#allocation7 + $0x330] sm:$0xff]
    %v447 = vld [vmem:[#allocation7 + $0x338] sm:$0xff]
    %v448 = vld [vmem:[#allocation7 + $0x340] sm:$0xff]
    %v449 = vld [vmem:[#allocation7 + $0x348] sm:$0xff]
    %v450 = vld [vmem:[#allocation7 + $0x350] sm:$0xff]
    %v451 = vld [vmem:[#allocation7 + $0x358] sm:$0xff]
    %v452 = vld [vmem:[#allocation7 + $0x360] sm:$0xff]
    %v453 = vld [vmem:[#allocation7 + $0x368] sm:$0xff]
    %v454 = vld [vmem:[#allocation7 + $0x370] sm:$0xff]
    %v455 = vld [vmem:[#allocation7 + $0x378] sm:$0xff]
    %v456 = vld [vmem:[#allocation7 + $0x380] sm:$0xff]
    %v457 = vld [vmem:[#allocation7 + $0x388] sm:$0xff]
    %v458 = vld [vmem:[#allocation7 + $0x390] sm:$0xff]
    %v459 = vld [vmem:[#allocation7 + $0x398] sm:$0xff]
    %v460 = vld [vmem:[#allocation7 + $0x3a0] sm:$0xff]
    %v461 = vld [vmem:[#allocation7 + $0x3a8] sm:$0xff]
    %v462 = vld [vmem:[#allocation7 + $0x3b0] sm:$0xff]
    %v463 = vld [vmem:[#allocation7 + $0x3b8] sm:$0xff]
    %v464 = vld [vmem:[#allocation7 + $0x3c0] sm:$0xff]
    %v465 = vld [vmem:[#allocation7 + $0x3c8] sm:$0xff]
    %v466 = vld [vmem:[#allocation7 + $0x3d0] sm:$0xff]
    %v467 = vld [vmem:[#allocation7 + $0x3d8] sm:$0xff]
    %v468 = vld [vmem:[#allocation7 + $0x3e0] sm:$0xff]
    %v469 = vld [vmem:[#allocation7 + $0x3e8] sm:$0xff]
    %v470 = vld [vmem:[#allocation7 + $0x3f0] sm:$0xff]
    %v471 = vld [vmem:[#allocation7 + $0x3f8] sm:$0xff]
    %v472 = vld [vmem:[#allocation7 + $0x400] sm:$0xff]
    %v473 = vld [vmem:[#allocation7 + $0x408] sm:$0xff]
    %v474 = vld [vmem:[#allocation7 + $0x410] sm:$0xff]
    %v475 = vld [vmem:[#allocation7 + $0x418] sm:$0xff]
    %v476 = vld [vmem:[#allocation7 + $0x420] sm:$0xff]
    %v477 = vld [vmem:[#allocation7 + $0x428] sm:$0xff]
    %v478 = vld [vmem:[#allocation7 + $0x430] sm:$0xff]
    %v479 = vld [vmem:[#allocation7 + $0x438] sm:$0xff]
    %v480 = vld [vmem:[#allocation7 + $0x440] sm:$0xff]
    %v481 = vld [vmem:[#allocation7 + $0x448] sm:$0xff]
    %v482 = vld [vmem:[#allocation7 + $0x450] sm:$0xff]
    %v483 = vld [vmem:[#allocation7 + $0x458] sm:$0xff]
    %v484 = vld [vmem:[#allocation7 + $0x460] sm:$0xff]
    %v485 = vld [vmem:[#allocation7 + $0x468] sm:$0xff]
    %v486 = vld [vmem:[#allocation7 + $0x470] sm:$0xff]
    %v487 = vld [vmem:[#allocation7 + $0x478] sm:$0xff]
    %v488 = vld [vmem:[#allocation7 + $0x480] sm:$0xff]
    %v489 = vld [vmem:[#allocation7 + $0x488] sm:$0xff]
    %v490 = vld [vmem:[#allocation7 + $0x490] sm:$0xff]
    %v491 = vld [vmem:[#allocation7 + $0x498] sm:$0xff]
    %v492 = vld [vmem:[#allocation7 + $0x4a0] sm:$0xff]
    %v493 = vld [vmem:[#allocation7 + $0x4a8] sm:$0xff]
    %v494 = vld [vmem:[#allocation7 + $0x4b0] sm:$0xff]
    %v495 = vld [vmem:[#allocation7 + $0x4b8] sm:$0xff]
    %v496 = vld [vmem:[#allocation7 + $0x4c0] sm:$0xff]
    %v497 = vld [vmem:[#allocation7 + $0x4c8] sm:$0xff]
    %v498 = vld [vmem:[#allocation7 + $0x4d0] sm:$0xff]
    %v499 = vld [vmem:[#allocation7 + $0x4d8] sm:$0xff]
    %v500 = vld [vmem:[#allocation7 + $0x4e0] sm:$0xff]
    %v501 = vld [vmem:[#allocation7 + $0x4e8] sm:$0xff]
    %v502 = vld [vmem:[#allocation7 + $0x4f0] sm:$0xff]
    %v503 = vld [vmem:[#allocation7 + $0x4f8] sm:$0xff]
    %v504 = vld [vmem:[#allocation7 + $0x500] sm:$0xff]
    %v505 = vld [vmem:[#allocation7 + $0x508] sm:$0xff]
    %v506 = vld [vmem:[#allocation7 + $0x510] sm:$0xff]
    %v507 = vld [vmem:[#allocation7 + $0x518] sm:$0xff]
    %v508 = vld [vmem:[#allocation7 + $0x520] sm:$0xff]
    %v509 = vld [vmem:[#allocation7 + $0x528] sm:$0xff]
    %v510 = vld [vmem:[#allocation7 + $0x530] sm:$0xff]
    %v511 = vld [vmem:[#allocation7 + $0x538] sm:$0xff]
    %v512 = vld [vmem:[#allocation7 + $0x540] sm:$0xff]
    %v513 = vld [vmem:[#allocation7 + $0x548] sm:$0xff]
    %v514 = vld [vmem:[#allocation7 + $0x550] sm:$0xff]
    %v515 = vld [vmem:[#allocation7 + $0x558] sm:$0xff]
    %v516 = vld [vmem:[#allocation7 + $0x560] sm:$0xff]
    %v517 = vld [vmem:[#allocation7 + $0x568] sm:$0xff]
    %v518 = vld [vmem:[#allocation7 + $0x570] sm:$0xff]
    %v519 = vld [vmem:[#allocation7 + $0x578] sm:$0xff]
    %v520 = vld [vmem:[#allocation7 + $0x580] sm:$0xff]
    %v521 = vld [vmem:[#allocation7 + $0x588] sm:$0xff]
    %v522 = vld [vmem:[#allocation7 + $0x590] sm:$0xff]
    %v523 = vld [vmem:[#allocation7 + $0x598] sm:$0xff]
    %v524 = vld [vmem:[#allocation7 + $0x5a0] sm:$0xff]
    %v525 = vld [vmem:[#allocation7 + $0x5a8] sm:$0xff]
    %v526 = vld [vmem:[#allocation7 + $0x5b0] sm:$0xff]
    %v527 = vld [vmem:[#allocation7 + $0x5b8] sm:$0xff]
    %v528 = vld [vmem:[#allocation7 + $0x5c0] sm:$0xff]
    %v529 = vld [vmem:[#allocation7 + $0x5c8] sm:$0xff]
    %v530 = vld [vmem:[#allocation7 + $0x5d0] sm:$0xff]
    %v531 = vld [vmem:[#allocation7 + $0x5d8] sm:$0xff]
    %v532 = vld [vmem:[#allocation7 + $0x5e0] sm:$0xff]
    %v533 = vld [vmem:[#allocation7 + $0x5e8] sm:$0xff]
    %v534 = vld [vmem:[#allocation7 + $0x5f0] sm:$0xff]
    %v535 = vld [vmem:[#allocation7 + $0x5f8] sm:$0xff]
    %v536 = vld [vmem:[#allocation7 + $0x600] sm:$0xff]
    %v537 = vld [vmem:[#allocation7 + $0x608] sm:$0xff]
    %v538 = vld [vmem:[#allocation7 + $0x610] sm:$0xff]
    %v539 = vld [vmem:[#allocation7 + $0x618] sm:$0xff]
    %v540 = vld [vmem:[#allocation7 + $0x620] sm:$0xff]
    %v541 = vld [vmem:[#allocation7 + $0x628] sm:$0xff]
    %v542 = vld [vmem:[#allocation7 + $0x630] sm:$0xff]
    %v543 = vld [vmem:[#allocation7 + $0x638] sm:$0xff]
    %v544 = vld [vmem:[#allocation7 + $0x640] sm:$0xff]
    %v545 = vld [vmem:[#allocation7 + $0x648] sm:$0xff]
    %v546 = vld [vmem:[#allocation7 + $0x650] sm:$0xff]
    %v547 = vld [vmem:[#allocation7 + $0x658] sm:$0xff]
    %v548 = vld [vmem:[#allocation7 + $0x660] sm:$0xff]
    %v549 = vld [vmem:[#allocation7 + $0x668] sm:$0xff]
    %v550 = vld [vmem:[#allocation7 + $0x670] sm:$0xff]
    %v551 = vld [vmem:[#allocation7 + $0x678] sm:$0xff]
    %v552 = vld [vmem:[#allocation7 + $0x680] sm:$0xff]
    %v553 = vld [vmem:[#allocation7 + $0x688] sm:$0xff]
    %v554 = vld [vmem:[#allocation7 + $0x690] sm:$0xff]
    %v555 = vld [vmem:[#allocation7 + $0x698] sm:$0xff]
    %v556 = vld [vmem:[#allocation7 + $0x6a0] sm:$0xff]
    %v557 = vld [vmem:[#allocation7 + $0x6a8] sm:$0xff]
    %v558 = vld [vmem:[#allocation7 + $0x6b0] sm:$0xff]
    %v559 = vld [vmem:[#allocation7 + $0x6b8] sm:$0xff]
    %v560 = vld [vmem:[#allocation7 + $0x6c0] sm:$0xff]
    %v561 = vld [vmem:[#allocation7 + $0x6c8] sm:$0xff]
    %v562 = vld [vmem:[#allocation7 + $0x6d0] sm:$0xff]
    %v563 = vld [vmem:[#allocation7 + $0x6d8] sm:$0xff]
    %v564 = vld [vmem:[#allocation7 + $0x6e0] sm:$0xff]
    %v565 = vld [vmem:[#allocation7 + $0x6e8] sm:$0xff]
    %v566 = vld [vmem:[#allocation7 + $0x6f0] sm:$0xff]
    %v567 = vld [vmem:[#allocation7 + $0x6f8] sm:$0xff]
    %v568 = vld [vmem:[#allocation7 + $0x700] sm:$0xff]
    %v569 = vld [vmem:[#allocation7 + $0x708] sm:$0xff]
    %v570 = vld [vmem:[#allocation7 + $0x710] sm:$0xff]
    %v571 = vld [vmem:[#allocation7 + $0x718] sm:$0xff]
    %v572 = vld [vmem:[#allocation7 + $0x720] sm:$0xff]
    %v573 = vld [vmem:[#allocation7 + $0x728] sm:$0xff]
    %v574 = vld [vmem:[#allocation7 + $0x730] sm:$0xff]
    %v575 = vld [vmem:[#allocation7 + $0x738] sm:$0xff]
    %v576 = vld [vmem:[#allocation7 + $0x740] sm:$0xff]
    %v577 = vld [vmem:[#allocation7 + $0x748] sm:$0xff]
    %v578 = vld [vmem:[#allocation7 + $0x750] sm:$0xff]
    %v579 = vld [vmem:[#allocation7 + $0x758] sm:$0xff]
    %v580 = vld [vmem:[#allocation7 + $0x760] sm:$0xff]
    %v581 = vld [vmem:[#allocation7 + $0x768] sm:$0xff]
    %v582 = vld [vmem:[#allocation7 + $0x770] sm:$0xff]
    %v583 = vld [vmem:[#allocation7 + $0x778] sm:$0xff]
    %v584 = vld [vmem:[#allocation7 + $0x780] sm:$0xff]
    %v585 = vld [vmem:[#allocation7 + $0x788] sm:$0xff]
    %v586 = vld [vmem:[#allocation7 + $0x790] sm:$0xff]
    %v587 = vld [vmem:[#allocation7 + $0x798] sm:$0xff]
    %v588 = vld [vmem:[#allocation7 + $0x7a0] sm:$0xff]
    %v589 = vld [vmem:[#allocation7 + $0x7a8] sm:$0xff]
    %v590 = vld [vmem:[#allocation7 + $0x7b0] sm:$0xff]
    %v591 = vld [vmem:[#allocation7 + $0x7b8] sm:$0xff]
    %v592 = vld [vmem:[#allocation7 + $0x7c0] sm:$0xff]
    %v593 = vld [vmem:[#allocation7 + $0x7c8] sm:$0xff]
    %v594 = vld [vmem:[#allocation7 + $0x7d0] sm:$0xff]
    %v595 = vld [vmem:[#allocation7 + $0x7d8] sm:$0xff]
    %v596 = vld [vmem:[#allocation7 + $0x7e0] sm:$0xff]
    %v597 = vld [vmem:[#allocation7 + $0x7e8] sm:$0xff]
    %v598 = vld [vmem:[#allocation7 + $0x7f0] sm:$0xff]
    %v599 = vld [vmem:[#allocation7 + $0x7f8] sm:$0xff]
    %v600 = vld [vmem:[#allocation7 + $0x800] sm:$0xff]
    %v601 = vld [vmem:[#allocation7 + $0x808] sm:$0xff]
    %v602 = vld [vmem:[#allocation7 + $0x810] sm:$0xff]
    %v603 = vld [vmem:[#allocation7 + $0x818] sm:$0xff]
    %v604 = vld [vmem:[#allocation7 + $0x820] sm:$0xff]
    %v605 = vld [vmem:[#allocation7 + $0x828] sm:$0xff]
    %v606 = vld [vmem:[#allocation7 + $0x830] sm:$0xff]
    %v607 = vld [vmem:[#allocation7 + $0x838] sm:$0xff]
    %v608 = vld [vmem:[#allocation7 + $0x840] sm:$0xff]
    %v609 = vld [vmem:[#allocation7 + $0x848] sm:$0xff]
    %v610 = vld [vmem:[#allocation7 + $0x850] sm:$0xff]
    %v611 = vld [vmem:[#allocation7 + $0x858] sm:$0xff]
    %v612 = vld [vmem:[#allocation7 + $0x860] sm:$0xff]
    %v613 = vld [vmem:[#allocation7 + $0x868] sm:$0xff]
    %v614 = vld [vmem:[#allocation7 + $0x870] sm:$0xff]
    %v615 = vld [vmem:[#allocation7 + $0x878] sm:$0xff]
    %v616 = vld [vmem:[#allocation7 + $0x880] sm:$0xff]
    %v617 = vld [vmem:[#allocation7 + $0x888] sm:$0xff]
    %v618 = vld [vmem:[#allocation7 + $0x890] sm:$0xff]
    %v619 = vld [vmem:[#allocation7 + $0x898] sm:$0xff]
    %v620 = vld [vmem:[#allocation7 + $0x8a0] sm:$0xff]
    %v621 = vld [vmem:[#allocation7 + $0x8a8] sm:$0xff]
    %v622 = vld [vmem:[#allocation7 + $0x8b0] sm:$0xff]
    %v623 = vld [vmem:[#allocation7 + $0x8b8] sm:$0xff]
    %v624 = vld [vmem:[#allocation7 + $0x8c0] sm:$0xff]
    %v625 = vld [vmem:[#allocation7 + $0x8c8] sm:$0xff]
    %v626 = vld [vmem:[#allocation7 + $0x8d0] sm:$0xff]
    %v627 = vld [vmem:[#allocation7 + $0x8d8] sm:$0xff]
    %v628 = vld [vmem:[#allocation7 + $0x8e0] sm:$0xff]
    %v629 = vld [vmem:[#allocation7 + $0x8e8] sm:$0xff]
    %v630 = vld [vmem:[#allocation7 + $0x8f0] sm:$0xff]
    %v631 = vld [vmem:[#allocation7 + $0x8f8] sm:$0xff]
    %v632 = vld [vmem:[#allocation7 + $0x900] sm:$0xff]
    %v633 = vld [vmem:[#allocation7 + $0x908] sm:$0xff]
    %v634 = vld [vmem:[#allocation7 + $0x910] sm:$0xff]
    %v635 = vld [vmem:[#allocation7 + $0x918] sm:$0xff]
    %v636 = vld [vmem:[#allocation7 + $0x920] sm:$0xff]
    %v637 = vld [vmem:[#allocation7 + $0x928] sm:$0xff]
    %v638 = vld [vmem:[#allocation7 + $0x930] sm:$0xff]
    %v639 = vld [vmem:[#allocation7 + $0x938] sm:$0xff]
    %v640 = vld [vmem:[#allocation7 + $0x940] sm:$0xff]
    %v641 = vld [vmem:[#allocation7 + $0x948] sm:$0xff]
    %v642 = vld [vmem:[#allocation7 + $0x950] sm:$0xff]
    %v643 = vld [vmem:[#allocation7 + $0x958] sm:$0xff]
    %v644 = vld [vmem:[#allocation7 + $0x960] sm:$0xff]
    %v645 = vld [vmem:[#allocation7 + $0x968] sm:$0xff]
    %v646 = vld [vmem:[#allocation7 + $0x970] sm:$0xff]
    %v647 = vld [vmem:[#allocation7 + $0x978] sm:$0xff]
    %v648 = vld [vmem:[#allocation7 + $0x980] sm:$0xff]
    %v649 = vld [vmem:[#allocation7 + $0x988] sm:$0xff]
    %v650 = vld [vmem:[#allocation7 + $0x990] sm:$0xff]
    %v651 = vld [vmem:[#allocation7 + $0x998] sm:$0xff]
    %v652 = vld [vmem:[#allocation7 + $0x9a0] sm:$0xff]
    %v653 = vld [vmem:[#allocation7 + $0x9a8] sm:$0xff]
    %v654 = vld [vmem:[#allocation7 + $0x9b0] sm:$0xff]
    %v655 = vld [vmem:[#allocation7 + $0x9b8] sm:$0xff]
    %v656 = vld [vmem:[#allocation7 + $0x9c0] sm:$0xff]
    %v657 = vld [vmem:[#allocation7 + $0x9c8] sm:$0xff]
    %v658 = vld [vmem:[#allocation7 + $0x9d0] sm:$0xff]
    %v659 = vld [vmem:[#allocation7 + $0x9d8] sm:$0xff]
    %v660 = vld [vmem:[#allocation7 + $0x9e0] sm:$0xff]
    %v661 = vld [vmem:[#allocation7 + $0x9e8] sm:$0xff]
    %v662 = vld [vmem:[#allocation7 + $0x9f0] sm:$0xff]
    %v663 = vld [vmem:[#allocation7 + $0x9f8] sm:$0xff]
    %v664 = vld [vmem:[#allocation7 + $0xa00] sm:$0xff]
    %v665 = vld [vmem:[#allocation7 + $0xa08] sm:$0xff]
    %v666 = vld [vmem:[#allocation7 + $0xa10] sm:$0xff]
    %v667 = vld [vmem:[#allocation7 + $0xa18] sm:$0xff]
    %v668 = vld [vmem:[#allocation7 + $0xa20] sm:$0xff]
    %v669 = vld [vmem:[#allocation7 + $0xa28] sm:$0xff]
    %v670 = vld [vmem:[#allocation7 + $0xa30] sm:$0xff]
    %v671 = vld [vmem:[#allocation7 + $0xa38] sm:$0xff]
    %v672 = vld [vmem:[#allocation7 + $0xa40] sm:$0xff]
    %v673 = vld [vmem:[#allocation7 + $0xa48] sm:$0xff]
    %v674 = vld [vmem:[#allocation7 + $0xa50] sm:$0xff]
    %v675 = vld [vmem:[#allocation7 + $0xa58] sm:$0xff]
    %v676 = vld [vmem:[#allocation7 + $0xa60] sm:$0xff]
    %v677 = vld [vmem:[#allocation7 + $0xa68] sm:$0xff]
    %v678 = vld [vmem:[#allocation7 + $0xa70] sm:$0xff]
    %v679 = vld [vmem:[#allocation7 + $0xa78] sm:$0xff]
    %v680 = vld [vmem:[#allocation7 + $0xa80] sm:$0xff]
    %v681 = vld [vmem:[#allocation7 + $0xa88] sm:$0xff]
    %v682 = vld [vmem:[#allocation7 + $0xa90] sm:$0xff]
    %v683 = vld [vmem:[#allocation7 + $0xa98] sm:$0xff]
    %v684 = vld [vmem:[#allocation7 + $0xaa0] sm:$0xff]
    %v685 = vld [vmem:[#allocation7 + $0xaa8] sm:$0xff]
    %v686 = vld [vmem:[#allocation7 + $0xab0] sm:$0xff]
    %v687 = vld [vmem:[#allocation7 + $0xab8] sm:$0xff]
    %v688 = vld [vmem:[#allocation7 + $0xac0] sm:$0xff]
    %v689 = vld [vmem:[#allocation7 + $0xac8] sm:$0xff]
    %v690 = vld [vmem:[#allocation7 + $0xad0] sm:$0xff]
    %v691 = vld [vmem:[#allocation7 + $0xad8] sm:$0xff]
    %v692 = vld [vmem:[#allocation7 + $0xae0] sm:$0xff]
    %v693 = vld [vmem:[#allocation7 + $0xae8] sm:$0xff]
    %v694 = vld [vmem:[#allocation7 + $0xaf0] sm:$0xff]
    %v695 = vld [vmem:[#allocation7 + $0xaf8] sm:$0xff]
    %v696 = vld [vmem:[#allocation7 + $0xb00] sm:$0xff]
    %v697 = vld [vmem:[#allocation7 + $0xb08] sm:$0xff]
    %v698 = vld [vmem:[#allocation7 + $0xb10] sm:$0xff]
    %v699 = vld [vmem:[#allocation7 + $0xb18] sm:$0xff]
    %v700 = vld [vmem:[#allocation7 + $0xb20] sm:$0xff]
    %v701 = vld [vmem:[#allocation7 + $0xb28] sm:$0xff]
    %v702 = vld [vmem:[#allocation7 + $0xb30] sm:$0xff]
    %v703 = vld [vmem:[#allocation7 + $0xb38] sm:$0xff]
    %v704 = vld [vmem:[#allocation7 + $0xb40] sm:$0xff]
    %v705 = vld [vmem:[#allocation7 + $0xb48] sm:$0xff]
    %v706 = vld [vmem:[#allocation7 + $0xb50] sm:$0xff]
    %v707 = vld [vmem:[#allocation7 + $0xb58] sm:$0xff]
    %v708 = vld [vmem:[#allocation7 + $0xb60] sm:$0xff]
    %v709 = vld [vmem:[#allocation7 + $0xb68] sm:$0xff]
    %v710 = vld [vmem:[#allocation7 + $0xb70] sm:$0xff]
    %v711 = vld [vmem:[#allocation7 + $0xb78] sm:$0xff]
    %v712 = vld [vmem:[#allocation7 + $0xb80] sm:$0xff]
    %v713 = vld [vmem:[#allocation7 + $0xb88] sm:$0xff]
    %v714 = vld [vmem:[#allocation7 + $0xb90] sm:$0xff]
    %v715 = vld [vmem:[#allocation7 + $0xb98] sm:$0xff]
    %v716 = vld [vmem:[#allocation7 + $0xba0] sm:$0xff]
    %v717 = vld [vmem:[#allocation7 + $0xba8] sm:$0xff]
    %v718 = vld [vmem:[#allocation7 + $0xbb0] sm:$0xff]
    %v719 = vld [vmem:[#allocation7 + $0xbb8] sm:$0xff]
    %v720 = vld [vmem:[#allocation7 + $0xbc0] sm:$0xff]
    %v721 = vld [vmem:[#allocation7 + $0xbc8] sm:$0xff]
    %v722 = vld [vmem:[#allocation7 + $0xbd0] sm:$0xff]
    %v723 = vld [vmem:[#allocation7 + $0xbd8] sm:$0xff]
    %v724 = vld [vmem:[#allocation7 + $0xbe0] sm:$0xff]
    %v725 = vld [vmem:[#allocation7 + $0xbe8] sm:$0xff]
    %v726 = vld [vmem:[#allocation7 + $0xbf0] sm:$0xff]
    %v727 = vld [vmem:[#allocation7 + $0xbf8] sm:$0xff]
    %v728 = vld [vmem:[#allocation5] sm:$0xff]
    %vm741 = vcmask 1041409
    %v742 = vsel %vm741, %v313, %v277
    %v743 = vsel %vm741, %v319, %v283
    %v744 = vsel %vm741, %v325, %v289
    %v745 = vsel %vm741, %v331, %v295
    %v746 = vsel %vm741, %v337, %v301
    %v747 = vsel %vm741, %v343, %v307
    %v755 = vcombine.high %v728, %v728
    %v757 = vunpack.c.l.s4 1983009808
    %v758 = vunpack.c.0.s8 %v757
    %v759 = vlaneseq
    %v760 = vshrl.u32 %v759, 7
    %v761 = vsub.s32 %v758, %v760
    %v762 = vrot.slane %v728, %v761
    %v764 = vunpack.c.l.s4 1983009808
    %v765 = vunpack.c.0.s8 %v764
    %v766 = vlaneseq
    %v767 = vshrl.u32 %v766, 7
    %v768 = vsub.s32 %v765, %v767
    %v769 = vrot.slane %v755, %v768
    %v770 = vcombine.high %v762, %v762
    %v771 = vcombine.high %v769, %v769
    %776 = vmatprep.subr.mxu0 %v345
    %777 = vmatpush1.msra.mxu0 %v344
    %778 = vmatprep.subr.mxu0 %v349
    %779 = vmatpush1.msra.mxu0 %v348
    %780 = vmatprep.subr.mxu0 %v353
    %781 = vmatpush1.msra.mxu0 %v352
    %782 = vmatprep.subr.mxu0 %v357
    %783 = vmatpush1.msra.mxu0 %v356
    %784 = vmatprep.subr.mxu0 %v361
    %785 = vmatpush1.msra.mxu0 %v360
    %786 = vmatprep.subr.mxu0 %v365
    %787 = vmatpush1.msra.mxu0 %v364
    %788 = vmatprep.subr.mxu0 %v369
    %789 = vmatpush1.msra.mxu0 %v368
    %790 = vmatprep.subr.mxu0 %v373
    %791 = vmatpush1.msra.mxu0 %v372
    %792 = vmatprep.subr.mxu0 %v377
    %793 = vmatpush1.msra.mxu0 %v376
    %794 = vmatprep.subr.mxu0 %v381
    %795 = vmatpush1.msra.mxu0 %v380
    %796 = vmatprep.subr.mxu0 %v385
    %797 = vmatpush1.msra.mxu0 %v384
    %798 = vmatprep.subr.mxu0 %v389
    %799 = vmatpush1.msra.mxu0 %v388
    %800 = vmatprep.subr.mxu0 %v393
    %801 = vmatpush1.msra.mxu0 %v392
    %802 = vmatprep.subr.mxu0 %v397
    %803 = vmatpush1.msra.mxu0 %v396
    %804 = vmatprep.subr.mxu0 %v401
    %805 = vmatpush1.msra.mxu0 %v400
    %806 = vmatprep.subr.mxu0 %v405
    %807 = vmatpush1.msra.mxu0 %v404
    %808 = vmatprep.subr.mxu0 %v409
    %809 = vmatpush1.msra.mxu0 %v408
    %810 = vmatprep.subr.mxu0 %v413
    %811 = vmatpush1.msra.mxu0 %v412
    %812 = vmatprep.subr.mxu0 %v417
    %813 = vmatpush1.msra.mxu0 %v416
    %814 = vmatprep.subr.mxu0 %v421
    %815 = vmatpush1.msra.mxu0 %v420
    %816 = vmatprep.subr.mxu0 %v425
    %817 = vmatpush1.msra.mxu0 %v424
    %818 = vmatprep.subr.mxu0 %v429
    %819 = vmatpush1.msra.mxu0 %v428
    %820 = vmatprep.subr.mxu0 %v433
    %821 = vmatpush1.msra.mxu0 %v432
    %822 = vmatprep.subr.mxu0 %v437
    %823 = vmatpush1.msra.mxu0 %v436
    %824 = vmatprep.subr.mxu0 %v441
    %825 = vmatpush1.msra.mxu0 %v440
    %826 = vmatprep.subr.mxu0 %v445
    %827 = vmatpush1.msra.mxu0 %v444
    %828 = vmatprep.subr.mxu0 %v449
    %829 = vmatpush1.msra.mxu0 %v448
    %830 = vmatprep.subr.mxu0 %v453
    %831 = vmatpush1.msra.mxu0 %v452
    %832 = vmatprep.subr.mxu0 %v457
    %833 = vmatpush1.msra.mxu0 %v456
    %834 = vmatprep.subr.mxu0 %v461
    %835 = vmatpush1.msra.mxu0 %v460
    %836 = vmatprep.subr.mxu0 %v465
    %837 = vmatpush1.msra.mxu0 %v464
    %838 = vmatprep.subr.mxu0 %v469
    %839 = vmatpush1.msra.mxu0 %v468
    %840 = vmatprep.mubr.f32.mxu0 %v743
    %841 = vmatmul.mubr.f32.gmra.mrb[0].mxu0 %v742
    %v842 = vpop.f32.mrb[0].mxu0
    %v843 = vadd.f32 %v762, %v842
    %v844 = vpop.f32.mrb[0].mxu0
    %v845 = vadd.f32 %v770, %v844
    %846 = vdwg.mxu0
    %847 = vmatprep.subr.mxu0 %v473
    %848 = vmatpush1.msra.mxu0 %v472
    %849 = vmatprep.subr.mxu0 %v477
    %850 = vmatpush1.msra.mxu0 %v476
    %851 = vmatprep.subr.mxu0 %v481
    %852 = vmatpush1.msra.mxu0 %v480
    %853 = vmatprep.subr.mxu0 %v485
    %854 = vmatpush1.msra.mxu0 %v484
    %855 = vmatprep.subr.mxu0 %v489
    %856 = vmatpush1.msra.mxu0 %v488
    %857 = vmatprep.subr.mxu0 %v493
    %858 = vmatpush1.msra.mxu0 %v492
    %859 = vmatprep.subr.mxu0 %v497
    %860 = vmatpush1.msra.mxu0 %v496
    %861 = vmatprep.subr.mxu0 %v501
    %862 = vmatpush1.msra.mxu0 %v500
    %863 = vmatprep.subr.mxu0 %v505
    %864 = vmatpush1.msra.mxu0 %v504
    %865 = vmatprep.subr.mxu0 %v509
    %866 = vmatpush1.msra.mxu0 %v508
    %867 = vmatprep.subr.mxu0 %v513
    %868 = vmatpush1.msra.mxu0 %v512
    %869 = vmatprep.subr.mxu0 %v517
    %870 = vmatpush1.msra.mxu0 %v516
    %871 = vmatprep.subr.mxu0 %v521
    %872 = vmatpush1.msra.mxu0 %v520
    %873 = vmatprep.subr.mxu0 %v525
    %874 = vmatpush1.msra.mxu0 %v524
    %875 = vmatprep.subr.mxu0 %v529
    %876 = vmatpush1.msra.mxu0 %v528
    %877 = vmatprep.subr.mxu0 %v533
    %878 = vmatpush1.msra.mxu0 %v532
    %879 = vmatprep.subr.mxu0 %v537
    %880 = vmatpush1.msra.mxu0 %v536
    %881 = vmatprep.subr.mxu0 %v541
    %882 = vmatpush1.msra.mxu0 %v540
    %883 = vmatprep.subr.mxu0 %v545
    %884 = vmatpush1.msra.mxu0 %v544
    %885 = vmatprep.subr.mxu0 %v549
    %886 = vmatpush1.msra.mxu0 %v548
    %887 = vmatprep.subr.mxu0 %v553
    %888 = vmatpush1.msra.mxu0 %v552
    %889 = vmatprep.subr.mxu0 %v557
    %890 = vmatpush1.msra.mxu0 %v556
    %891 = vmatprep.subr.mxu0 %v561
    %892 = vmatpush1.msra.mxu0 %v560
    %893 = vmatprep.subr.mxu0 %v565
    %894 = vmatpush1.msra.mxu0 %v564
    %895 = vmatprep.subr.mxu0 %v569
    %896 = vmatpush1.msra.mxu0 %v568
    %897 = vmatprep.subr.mxu0 %v573
    %898 = vmatpush1.msra.mxu0 %v572
    %899 = vmatprep.subr.mxu0 %v577
    %900 = vmatpush1.msra.mxu0 %v576
    %901 = vmatprep.subr.mxu0 %v581
    %902 = vmatpush1.msra.mxu0 %v580
    %903 = vmatprep.subr.mxu0 %v585
    %904 = vmatpush1.msra.mxu0 %v584
    %905 = vmatprep.subr.mxu0 %v589
    %906 = vmatpush1.msra.mxu0 %v588
    %907 = vmatprep.subr.mxu0 %v593
    %908 = vmatpush1.msra.mxu0 %v592
    %909 = vmatprep.subr.mxu0 %v597
    %910 = vmatpush1.msra.mxu0 %v596
    %911 = vmatprep.mubr.f32.mxu0 %v745
    %912 = vmatmul.mubr.f32.gmra.mrb[0].mxu0 %v744
    %v913 = vpop.f32.mrb[0].mxu0
    %v914 = vadd.f32 %v843, %v913
    %v915 = vpop.f32.mrb[0].mxu0
    %v916 = vadd.f32 %v845, %v915
    %917 = vdwg.mxu0
    %918 = vmatprep.subr.mxu0 %v601
    %919 = vmatpush1.msra.mxu0 %v600
    %920 = vmatprep.subr.mxu0 %v605
    %921 = vmatpush1.msra.mxu0 %v604
    %922 = vmatprep.subr.mxu0 %v609
    %923 = vmatpush1.msra.mxu0 %v608
    %924 = vmatprep.subr.mxu0 %v613
    %925 = vmatpush1.msra.mxu0 %v612
    %926 = vmatprep.subr.mxu0 %v617
    %927 = vmatpush1.msra.mxu0 %v616
    %928 = vmatprep.subr.mxu0 %v621
    %929 = vmatpush1.msra.mxu0 %v620
    %930 = vmatprep.subr.mxu0 %v625
    %931 = vmatpush1.msra.mxu0 %v624
    %932 = vmatprep.subr.mxu0 %v629
    %933 = vmatpush1.msra.mxu0 %v628
    %934 = vmatprep.subr.mxu0 %v633
    %935 = vmatpush1.msra.mxu0 %v632
    %936 = vmatprep.subr.mxu0 %v637
    %937 = vmatpush1.msra.mxu0 %v636
    %938 = vmatprep.subr.mxu0 %v641
    %939 = vmatpush1.msra.mxu0 %v640
    %940 = vmatprep.subr.mxu0 %v645
    %941 = vmatpush1.msra.mxu0 %v644
    %942 = vmatprep.subr.mxu0 %v649
    %943 = vmatpush1.msra.mxu0 %v648
    %944 = vmatprep.subr.mxu0 %v653
    %945 = vmatpush1.msra.mxu0 %v652
    %946 = vmatprep.subr.mxu0 %v657
    %947 = vmatpush1.msra.mxu0 %v656
    %948 = vmatprep.subr.mxu0 %v661
    %949 = vmatpush1.msra.mxu0 %v660
    %950 = vmatprep.subr.mxu0 %v665
    %951 = vmatpush1.msra.mxu0 %v664
    %952 = vmatprep.subr.mxu0 %v669
    %953 = vmatpush1.msra.mxu0 %v668
    %954 = vmatprep.subr.mxu0 %v673
    %955 = vmatpush1.msra.mxu0 %v672
    %956 = vmatprep.subr.mxu0 %v677
    %957 = vmatpush1.msra.mxu0 %v676
    %958 = vmatprep.subr.mxu0 %v681
    %959 = vmatpush1.msra.mxu0 %v680
    %960 = vmatprep.subr.mxu0 %v685
    %961 = vmatpush1.msra.mxu0 %v684
    %962 = vmatprep.subr.mxu0 %v689
    %963 = vmatpush1.msra.mxu0 %v688
    %964 = vmatprep.subr.mxu0 %v693
    %965 = vmatpush1.msra.mxu0 %v692
    %966 = vmatprep.subr.mxu0 %v697
    %967 = vmatpush1.msra.mxu0 %v696
    %968 = vmatprep.subr.mxu0 %v701
    %969 = vmatpush1.msra.mxu0 %v700
    %970 = vmatprep.subr.mxu0 %v705
    %971 = vmatpush1.msra.mxu0 %v704
    %972 = vmatprep.subr.mxu0 %v709
    %973 = vmatpush1.msra.mxu0 %v708
    %974 = vmatprep.subr.mxu0 %v713
    %975 = vmatpush1.msra.mxu0 %v712
    %976 = vmatprep.subr.mxu0 %v717
    %977 = vmatpush1.msra.mxu0 %v716
    %978 = vmatprep.subr.mxu0 %v721
    %979 = vmatpush1.msra.mxu0 %v720
    %980 = vmatprep.subr.mxu0 %v725
    %981 = vmatpush1.msra.mxu0 %v724
    %982 = vmatprep.mubr.f32.mxu0 %v747
    %983 = vmatmul.mubr.f32.gmra.mrb[0].mxu0 %v746
    %v984 = vpop.f32.mrb[0].mxu0
    %v985 = vadd.f32 %v914, %v984
    %v986 = vpop.f32.mrb[0].mxu0
    %v987 = vadd.f32 %v916, %v986
    %988 = vdwg.mxu0
    %989 = vmatprep.subr.mxu0 %v347
    %990 = vmatpush1.msra.mxu0 %v346
    %991 = vmatprep.subr.mxu0 %v351
    %992 = vmatpush1.msra.mxu0 %v350
    %993 = vmatprep.subr.mxu0 %v355
    %994 = vmatpush1.msra.mxu0 %v354
    %995 = vmatprep.subr.mxu0 %v359
    %996 = vmatpush1.msra.mxu0 %v358
    %997 = vmatprep.subr.mxu0 %v363
    %998 = vmatpush1.msra.mxu0 %v362
    %999 = vmatprep.subr.mxu0 %v367
    %1000 = vmatpush1.msra.mxu0 %v366
    %1001 = vmatprep.subr.mxu0 %v371
    %1002 = vmatpush1.msra.mxu0 %v370
    %1003 = vmatprep.subr.mxu0 %v375
    %1004 = vmatpush1.msra.mxu0 %v374
    %1005 = vmatprep.subr.mxu0 %v379
    %1006 = vmatpush1.msra.mxu0 %v378
    %1007 = vmatprep.subr.mxu0 %v383
    %1008 = vmatpush1.msra.mxu0 %v382
    %1009 = vmatprep.subr.mxu0 %v387
    %1010 = vmatpush1.msra.mxu0 %v386
    %1011 = vmatprep.subr.mxu0 %v391
    %1012 = vmatpush1.msra.mxu0 %v390
    %1013 = vmatprep.subr.mxu0 %v395
    %1014 = vmatpush1.msra.mxu0 %v394
    %1015 = vmatprep.subr.mxu0 %v399
    %1016 = vmatpush1.msra.mxu0 %v398
    %1017 = vmatprep.subr.mxu0 %v403
    %1018 = vmatpush1.msra.mxu0 %v402
    %1019 = vmatprep.subr.mxu0 %v407
    %1020 = vmatpush1.msra.mxu0 %v406
    %1021 = vmatprep.subr.mxu0 %v411
    %1022 = vmatpush1.msra.mxu0 %v410
    %1023 = vmatprep.subr.mxu0 %v415
    %1024 = vmatpush1.msra.mxu0 %v414
    %1025 = vmatprep.subr.mxu0 %v419
    %1026 = vmatpush1.msra.mxu0 %v418
    %1027 = vmatprep.subr.mxu0 %v423
    %1028 = vmatpush1.msra.mxu0 %v422
    %1029 = vmatprep.subr.mxu0 %v427
    %1030 = vmatpush1.msra.mxu0 %v426
    %1031 = vmatprep.subr.mxu0 %v431
    %1032 = vmatpush1.msra.mxu0 %v430
    %1033 = vmatprep.subr.mxu0 %v435
    %1034 = vmatpush1.msra.mxu0 %v434
    %1035 = vmatprep.subr.mxu0 %v439
    %1036 = vmatpush1.msra.mxu0 %v438
    %1037 = vmatprep.subr.mxu0 %v443
    %1038 = vmatpush1.msra.mxu0 %v442
    %1039 = vmatprep.subr.mxu0 %v447
    %1040 = vmatpush1.msra.mxu0 %v446
    %1041 = vmatprep.subr.mxu0 %v451
    %1042 = vmatpush1.msra.mxu0 %v450
    %1043 = vmatprep.subr.mxu0 %v455
    %1044 = vmatpush1.msra.mxu0 %v454
    %1045 = vmatprep.subr.mxu0 %v459
    %1046 = vmatpush1.msra.mxu0 %v458
    %1047 = vmatprep.subr.mxu0 %v463
    %1048 = vmatpush1.msra.mxu0 %v462
    %1049 = vmatprep.subr.mxu0 %v467
    %1050 = vmatpush1.msra.mxu0 %v466
    %1051 = vmatprep.subr.mxu0 %v471
    %1052 = vmatpush1.msra.mxu0 %v470
    %1053 = vmatprep.mubr.f32.mxu0 %v743
    %1054 = vmatmul.mubr.f32.gmra.mrb[0].mxu0 %v742
    %v1055 = vpop.f32.mrb[0].mxu0
    %v1056 = vadd.f32 %v769, %v1055
    %v1057 = vpop.f32.mrb[0].mxu0
    %v1058 = vadd.f32 %v771, %v1057
    %1059 = vdwg.mxu0
    %1060 = vmatprep.subr.mxu0 %v475
    %1061 = vmatpush1.msra.mxu0 %v474
    %1062 = vmatprep.subr.mxu0 %v479
    %1063 = vmatpush1.msra.mxu0 %v478
    %1064 = vmatprep.subr.mxu0 %v483
    %1065 = vmatpush1.msra.mxu0 %v482
    %1066 = vmatprep.subr.mxu0 %v487
    %1067 = vmatpush1.msra.mxu0 %v486
    %1068 = vmatprep.subr.mxu0 %v491
    %1069 = vmatpush1.msra.mxu0 %v490
    %1070 = vmatprep.subr.mxu0 %v495
    %1071 = vmatpush1.msra.mxu0 %v494
    %1072 = vmatprep.subr.mxu0 %v499
    %1073 = vmatpush1.msra.mxu0 %v498
    %1074 = vmatprep.subr.mxu0 %v503
    %1075 = vmatpush1.msra.mxu0 %v502
    %1076 = vmatprep.subr.mxu0 %v507
    %1077 = vmatpush1.msra.mxu0 %v506
    %1078 = vmatprep.subr.mxu0 %v511
    %1079 = vmatpush1.msra.mxu0 %v510
    %1080 = vmatprep.subr.mxu0 %v515
    %1081 = vmatpush1.msra.mxu0 %v514
    %1082 = vmatprep.subr.mxu0 %v519
    %1083 = vmatpush1.msra.mxu0 %v518
    %1084 = vmatprep.subr.mxu0 %v523
    %1085 = vmatpush1.msra.mxu0 %v522
    %1086 = vmatprep.subr.mxu0 %v527
    %1087 = vmatpush1.msra.mxu0 %v526
    %1088 = vmatprep.subr.mxu0 %v531
    %1089 = vmatpush1.msra.mxu0 %v530
    %1090 = vmatprep.subr.mxu0 %v535
    %1091 = vmatpush1.msra.mxu0 %v534
    %1092 = vmatprep.subr.mxu0 %v539
    %1093 = vmatpush1.msra.mxu0 %v538
    %1094 = vmatprep.subr.mxu0 %v543
    %1095 = vmatpush1.msra.mxu0 %v542
    %1096 = vmatprep.subr.mxu0 %v547
    %1097 = vmatpush1.msra.mxu0 %v546
    %1098 = vmatprep.subr.mxu0 %v551
    %1099 = vmatpush1.msra.mxu0 %v550
    %1100 = vmatprep.subr.mxu0 %v555
    %1101 = vmatpush1.msra.mxu0 %v554
    %1102 = vmatprep.subr.mxu0 %v559
    %1103 = vmatpush1.msra.mxu0 %v558
    %1104 = vmatprep.subr.mxu0 %v563
    %1105 = vmatpush1.msra.mxu0 %v562
    %1106 = vmatprep.subr.mxu0 %v567
    %1107 = vmatpush1.msra.mxu0 %v566
    %1108 = vmatprep.subr.mxu0 %v571
    %1109 = vmatpush1.msra.mxu0 %v570
    %1110 = vmatprep.subr.mxu0 %v575
    %1111 = vmatpush1.msra.mxu0 %v574
    %1112 = vmatprep.subr.mxu0 %v579
    %1113 = vmatpush1.msra.mxu0 %v578
    %1114 = vmatprep.subr.mxu0 %v583
    %1115 = vmatpush1.msra.mxu0 %v582
    %1116 = vmatprep.subr.mxu0 %v587
    %1117 = vmatpush1.msra.mxu0 %v586
    %1118 = vmatprep.subr.mxu0 %v591
    %1119 = vmatpush1.msra.mxu0 %v590
    %1120 = vmatprep.subr.mxu0 %v595
    %1121 = vmatpush1.msra.mxu0 %v594
    %1122 = vmatprep.subr.mxu0 %v599
    %1123 = vmatpush1.msra.mxu0 %v598
    %1124 = vmatprep.mubr.f32.mxu0 %v745
    %1125 = vmatmul.mubr.f32.gmra.mrb[0].mxu0 %v744
    %v1126 = vpop.f32.mrb[0].mxu0
    %v1127 = vadd.f32 %v1056, %v1126
    %v1128 = vpop.f32.mrb[0].mxu0
    %v1129 = vadd.f32 %v1058, %v1128
    %1130 = vdwg.mxu0
    %1131 = vmatprep.subr.mxu0 %v603
    %1132 = vmatpush1.msra.mxu0 %v602
    %1133 = vmatprep.subr.mxu0 %v607
    %1134 = vmatpush1.msra.mxu0 %v606
    %1135 = vmatprep.subr.mxu0 %v611
    %1136 = vmatpush1.msra.mxu0 %v610
    %1137 = vmatprep.subr.mxu0 %v615
    %1138 = vmatpush1.msra.mxu0 %v614
    %1139 = vmatprep.subr.mxu0 %v619
    %1140 = vmatpush1.msra.mxu0 %v618
    %1141 = vmatprep.subr.mxu0 %v623
    %1142 = vmatpush1.msra.mxu0 %v622
    %1143 = vmatprep.subr.mxu0 %v627
    %1144 = vmatpush1.msra.mxu0 %v626
    %1145 = vmatprep.subr.mxu0 %v631
    %1146 = vmatpush1.msra.mxu0 %v630
    %1147 = vmatprep.subr.mxu0 %v635
    %1148 = vmatpush1.msra.mxu0 %v634
    %1149 = vmatprep.subr.mxu0 %v639
    %1150 = vmatpush1.msra.mxu0 %v638
    %1151 = vmatprep.subr.mxu0 %v643
    %1152 = vmatpush1.msra.mxu0 %v642
    %1153 = vmatprep.subr.mxu0 %v647
    %1154 = vmatpush1.msra.mxu0 %v646
    %1155 = vmatprep.subr.mxu0 %v651
    %1156 = vmatpush1.msra.mxu0 %v650
    %1157 = vmatprep.subr.mxu0 %v655
    %1158 = vmatpush1.msra.mxu0 %v654
    %1159 = vmatprep.subr.mxu0 %v659
    %1160 = vmatpush1.msra.mxu0 %v658
    %1161 = vmatprep.subr.mxu0 %v663
    %1162 = vmatpush1.msra.mxu0 %v662
    %1163 = vmatprep.subr.mxu0 %v667
    %1164 = vmatpush1.msra.mxu0 %v666
    %1165 = vmatprep.subr.mxu0 %v671
    %1166 = vmatpush1.msra.mxu0 %v670
    %1167 = vmatprep.subr.mxu0 %v675
    %1168 = vmatpush1.msra.mxu0 %v674
    %1169 = vmatprep.subr.mxu0 %v679
    %1170 = vmatpush1.msra.mxu0 %v678
    %1171 = vmatprep.subr.mxu0 %v683
    %1172 = vmatpush1.msra.mxu0 %v682
    %1173 = vmatprep.subr.mxu0 %v687
    %1174 = vmatpush1.msra.mxu0 %v686
    %1175 = vmatprep.subr.mxu0 %v691
    %1176 = vmatpush1.msra.mxu0 %v690
    %1177 = vmatprep.subr.mxu0 %v695
    %1178 = vmatpush1.msra.mxu0 %v694
    %1179 = vmatprep.subr.mxu0 %v699
    %1180 = vmatpush1.msra.mxu0 %v698
    %1181 = vmatprep.subr.mxu0 %v703
    %1182 = vmatpush1.msra.mxu0 %v702
    %1183 = vmatprep.subr.mxu0 %v707
    %1184 = vmatpush1.msra.mxu0 %v706
    %1185 = vmatprep.subr.mxu0 %v711
    %1186 = vmatpush1.msra.mxu0 %v710
    %1187 = vmatprep.subr.mxu0 %v715
    %1188 = vmatpush1.msra.mxu0 %v714
    %1189 = vmatprep.subr.mxu0 %v719
    %1190 = vmatpush1.msra.mxu0 %v718
    %1191 = vmatprep.subr.mxu0 %v723
    %1192 = vmatpush1.msra.mxu0 %v722
    %1193 = vmatprep.subr.mxu0 %v727
    %1194 = vmatpush1.msra.mxu0 %v726
    %1195 = vmatprep.mubr.f32.mxu0 %v747
    %1196 = vmatmul.mubr.f32.gmra.mrb[0].mxu0 %v746
    %v1197 = vpop.f32.mrb[0].mxu0
    %v1198 = vadd.f32 %v1127, %v1197
    %v1199 = vpop.f32.mrb[0].mxu0
    %v1200 = vadd.f32 %v1129, %v1199
    %1201 = vdwg.mxu0
    %v1202 = vmax.f32 %v985, 0.0
    %v1203 = vmax.f32 %v987, 0.0
    %v1204 = vmax.f32 %v1198, 0.0
    %v1205 = vmax.f32 %v1200, 0.0
    %v1206 = vld [vmem:[#allocation8] sm:$0xff]
    %v1207 = vld [vmem:[#allocation8 + $0x8] sm:$0xff]
    %v1208 = vld [vmem:[#allocation8 + $0x10] sm:$0xff]
    %v1209 = vld [vmem:[#allocation8 + $0x18] sm:$0xff]
    %v1210 = vld [vmem:[#allocation8 + $0x20] sm:$0xff]
    %v1211 = vld [vmem:[#allocation8 + $0x28] sm:$0xff]
    %v1212 = vld [vmem:[#allocation8 + $0x30] sm:$0xff]
    %v1213 = vld [vmem:[#allocation8 + $0x38] sm:$0xff]
    %v1214 = vld [vmem:[#allocation8 + $0x40] sm:$0xff]
    %v1215 = vld [vmem:[#allocation8 + $0x48] sm:$0xff]
    %v1216 = vld [vmem:[#allocation8 + $0x50] sm:$0xff]
    %v1217 = vld [vmem:[#allocation8 + $0x58] sm:$0xff]
    %v1218 = vld [vmem:[#allocation8 + $0x60] sm:$0xff]
    %v1219 = vld [vmem:[#allocation8 + $0x68] sm:$0xff]
    %v1220 = vld [vmem:[#allocation8 + $0x70] sm:$0xff]
    %v1221 = vld [vmem:[#allocation8 + $0x78] sm:$0xff]
    %v1222 = vld [vmem:[#allocation8 + $0x80] sm:$0xff]
    %v1223 = vld [vmem:[#allocation8 + $0x88] sm:$0xff]
    %v1224 = vld [vmem:[#allocation8 + $0x90] sm:$0xff]
    %v1225 = vld [vmem:[#allocation8 + $0x98] sm:$0xff]
    %v1226 = vld [vmem:[#allocation8 + $0xa0] sm:$0xff]
    %v1227 = vld [vmem:[#allocation8 + $0xa8] sm:$0xff]
    %v1228 = vld [vmem:[#allocation8 + $0xb0] sm:$0xff]
    %v1229 = vld [vmem:[#allocation8 + $0xb8] sm:$0xff]
    %v1230 = vld [vmem:[#allocation8 + $0xc0] sm:$0xff]
    %v1231 = vld [vmem:[#allocation8 + $0xc8] sm:$0xff]
    %v1232 = vld [vmem:[#allocation8 + $0xd0] sm:$0xff]
    %v1233 = vld [vmem:[#allocation8 + $0xd8] sm:$0xff]
    %v1234 = vld [vmem:[#allocation8 + $0xe0] sm:$0xff]
    %v1235 = vld [vmem:[#allocation8 + $0xe8] sm:$0xff]
    %v1236 = vld [vmem:[#allocation8 + $0xf0] sm:$0xff]
    %v1237 = vld [vmem:[#allocation8 + $0xf8] sm:$0xff]
    %v1238 = vld [vmem:[#allocation8 + $0x100] sm:$0xff]
    %v1239 = vld [vmem:[#allocation8 + $0x108] sm:$0xff]
    %v1240 = vld [vmem:[#allocation8 + $0x110] sm:$0xff]
    %v1241 = vld [vmem:[#allocation8 + $0x118] sm:$0xff]
    %v1242 = vld [vmem:[#allocation8 + $0x120] sm:$0xff]
    %v1243 = vld [vmem:[#allocation8 + $0x128] sm:$0xff]
    %v1244 = vld [vmem:[#allocation8 + $0x130] sm:$0xff]
    %v1245 = vld [vmem:[#allocation8 + $0x138] sm:$0xff]
    %v1246 = vld [vmem:[#allocation8 + $0x140] sm:$0xff]
    %v1247 = vld [vmem:[#allocation8 + $0x148] sm:$0xff]
    %v1248 = vld [vmem:[#allocation8 + $0x150] sm:$0xff]
    %v1249 = vld [vmem:[#allocation8 + $0x158] sm:$0xff]
    %v1250 = vld [vmem:[#allocation8 + $0x160] sm:$0xff]
    %v1251 = vld [vmem:[#allocation8 + $0x168] sm:$0xff]
    %v1252 = vld [vmem:[#allocation8 + $0x170] sm:$0xff]
    %v1253 = vld [vmem:[#allocation8 + $0x178] sm:$0xff]
    %v1254 = vld [vmem:[#allocation8 + $0x180] sm:$0xff]
    %v1255 = vld [vmem:[#allocation8 + $0x188] sm:$0xff]
    %v1256 = vld [vmem:[#allocation8 + $0x190] sm:$0xff]
    %v1257 = vld [vmem:[#allocation8 + $0x198] sm:$0xff]
    %v1258 = vld [vmem:[#allocation8 + $0x1a0] sm:$0xff]
    %v1259 = vld [vmem:[#allocation8 + $0x1a8] sm:$0xff]
    %v1260 = vld [vmem:[#allocation8 + $0x1b0] sm:$0xff]
    %v1261 = vld [vmem:[#allocation8 + $0x1b8] sm:$0xff]
    %v1262 = vld [vmem:[#allocation8 + $0x1c0] sm:$0xff]
    %v1263 = vld [vmem:[#allocation8 + $0x1c8] sm:$0xff]
    %v1264 = vld [vmem:[#allocation8 + $0x1d0] sm:$0xff]
    %v1265 = vld [vmem:[#allocation8 + $0x1d8] sm:$0xff]
    %v1266 = vld [vmem:[#allocation8 + $0x1e0] sm:$0xff]
    %v1267 = vld [vmem:[#allocation8 + $0x1e8] sm:$0xff]
    %v1268 = vld [vmem:[#allocation8 + $0x1f0] sm:$0xff]
    %v1269 = vld [vmem:[#allocation8 + $0x1f8] sm:$0xff]
    %v1270 = vld [vmem:[#allocation10] sm:$0x1]
    %v1272 = vlaneseq
    %v1273 = vshrl.u32 %v1272, 7
    %v1274 = vsub.s32 0, %v1273
    %v1275 = vrot.slane %v1270, %v1274
    %1277 = vmatprep.subr.mxu0 0.0
    %1278 = vmatpush1.msra.mxu0 %v1206
    %1279 = vmatprep.subr.mxu0 0.0
    %1280 = vmatpush1.msra.mxu0 %v1207
    %1281 = vmatprep.subr.mxu0 0.0
    %1282 = vmatpush1.msra.mxu0 %v1208
    %1283 = vmatprep.subr.mxu0 0.0
    %1284 = vmatpush1.msra.mxu0 %v1209
    %1285 = vmatprep.subr.mxu0 0.0
    %1286 = vmatpush1.msra.mxu0 %v1210
    %1287 = vmatprep.subr.mxu0 0.0
    %1288 = vmatpush1.msra.mxu0 %v1211
    %1289 = vmatprep.subr.mxu0 0.0
    %1290 = vmatpush1.msra.mxu0 %v1212
    %1291 = vmatprep.subr.mxu0 0.0
    %1292 = vmatpush1.msra.mxu0 %v1213
    %1293 = vmatprep.subr.mxu0 0.0
    %1294 = vmatpush1.msra.mxu0 %v1214
    %1295 = vmatprep.subr.mxu0 0.0
    %1296 = vmatpush1.msra.mxu0 %v1215
    %1297 = vmatprep.subr.mxu0 0.0
    %1298 = vmatpush1.msra.mxu0 %v1216
    %1299 = vmatprep.subr.mxu0 0.0
    %1300 = vmatpush1.msra.mxu0 %v1217
    %1301 = vmatprep.subr.mxu0 0.0
    %1302 = vmatpush1.msra.mxu0 %v1218
    %1303 = vmatprep.subr.mxu0 0.0
    %1304 = vmatpush1.msra.mxu0 %v1219
    %1305 = vmatprep.subr.mxu0 0.0
    %1306 = vmatpush1.msra.mxu0 %v1220
    %1307 = vmatprep.subr.mxu0 0.0
    %1308 = vmatpush1.msra.mxu0 %v1221
    %1309 = vmatprep.subr.mxu0 0.0
    %1310 = vmatpush1.msra.mxu0 %v1222
    %1311 = vmatprep.subr.mxu0 0.0
    %1312 = vmatpush1.msra.mxu0 %v1223
    %1313 = vmatprep.subr.mxu0 0.0
    %1314 = vmatpush1.msra.mxu0 %v1224
    %1315 = vmatprep.subr.mxu0 0.0
    %1316 = vmatpush1.msra.mxu0 %v1225
    %1317 = vmatprep.subr.mxu0 0.0
    %1318 = vmatpush1.msra.mxu0 %v1226
    %1319 = vmatprep.subr.mxu0 0.0
    %1320 = vmatpush1.msra.mxu0 %v1227
    %1321 = vmatprep.subr.mxu0 0.0
    %1322 = vmatpush1.msra.mxu0 %v1228
    %1323 = vmatprep.subr.mxu0 0.0
    %1324 = vmatpush1.msra.mxu0 %v1229
    %1325 = vmatprep.subr.mxu0 0.0
    %1326 = vmatpush1.msra.mxu0 %v1230
    %1327 = vmatprep.subr.mxu0 0.0
    %1328 = vmatpush1.msra.mxu0 %v1231
    %1329 = vmatprep.subr.mxu0 0.0
    %1330 = vmatpush1.msra.mxu0 %v1232
    %1331 = vmatprep.subr.mxu0 0.0
    %1332 = vmatpush1.msra.mxu0 %v1233
    %1333 = vmatprep.subr.mxu0 0.0
    %1334 = vmatpush1.msra.mxu0 %v1234
    %1335 = vmatprep.subr.mxu0 0.0
    %1336 = vmatpush1.msra.mxu0 %v1235
    %1337 = vmatprep.subr.mxu0 0.0
    %1338 = vmatpush1.msra.mxu0 %v1236
    %1339 = vmatprep.subr.mxu0 0.0
    %1340 = vmatpush1.msra.mxu0 %v1237
    %1341 = vmatprep.mubr.f32.mxu0 %v1203
    %1342 = vmatmul.mubr.f32.gmra.mrb[0].mxu0 %v1202
    %v1343 = vpop.f32.mrb[0].mxu0
    %v1344 = vadd.f32 %v1275, %v1343
    %v1345 = vpop.f32.mrb[0].mxu0
    %1346 = vdwg.mxu0
    %1347 = vmatprep.subr.mxu0 0.0
    %1348 = vmatpush1.msra.mxu0 %v1238
    %1349 = vmatprep.subr.mxu0 0.0
    %1350 = vmatpush1.msra.mxu0 %v1239
    %1351 = vmatprep.subr.mxu0 0.0
    %1352 = vmatpush1.msra.mxu0 %v1240
    %1353 = vmatprep.subr.mxu0 0.0
    %1354 = vmatpush1.msra.mxu0 %v1241
    %1355 = vmatprep.subr.mxu0 0.0
    %1356 = vmatpush1.msra.mxu0 %v1242
    %1357 = vmatprep.subr.mxu0 0.0
    %1358 = vmatpush1.msra.mxu0 %v1243
    %1359 = vmatprep.subr.mxu0 0.0
    %1360 = vmatpush1.msra.mxu0 %v1244
    %1361 = vmatprep.subr.mxu0 0.0
    %1362 = vmatpush1.msra.mxu0 %v1245
    %1363 = vmatprep.subr.mxu0 0.0
    %1364 = vmatpush1.msra.mxu0 %v1246
    %1365 = vmatprep.subr.mxu0 0.0
    %1366 = vmatpush1.msra.mxu0 %v1247
    %1367 = vmatprep.subr.mxu0 0.0
    %1368 = vmatpush1.msra.mxu0 %v1248
    %1369 = vmatprep.subr.mxu0 0.0
    %1370 = vmatpush1.msra.mxu0 %v1249
    %1371 = vmatprep.subr.mxu0 0.0
    %1372 = vmatpush1.msra.mxu0 %v1250
    %1373 = vmatprep.subr.mxu0 0.0
    %1374 = vmatpush1.msra.mxu0 %v1251
    %1375 = vmatprep.subr.mxu0 0.0
    %1376 = vmatpush1.msra.mxu0 %v1252
    %1377 = vmatprep.subr.mxu0 0.0
    %1378 = vmatpush1.msra.mxu0 %v1253
    %1379 = vmatprep.subr.mxu0 0.0
    %1380 = vmatpush1.msra.mxu0 %v1254
    %1381 = vmatprep.subr.mxu0 0.0
    %1382 = vmatpush1.msra.mxu0 %v1255
    %1383 = vmatprep.subr.mxu0 0.0
    %1384 = vmatpush1.msra.mxu0 %v1256
    %1385 = vmatprep.subr.mxu0 0.0
    %1386 = vmatpush1.msra.mxu0 %v1257
    %1387 = vmatprep.subr.mxu0 0.0
    %1388 = vmatpush1.msra.mxu0 %v1258
    %1389 = vmatprep.subr.mxu0 0.0
    %1390 = vmatpush1.msra.mxu0 %v1259
    %1391 = vmatprep.subr.mxu0 0.0
    %1392 = vmatpush1.msra.mxu0 %v1260
    %1393 = vmatprep.subr.mxu0 0.0
    %1394 = vmatpush1.msra.mxu0 %v1261
    %1395 = vmatprep.subr.mxu0 0.0
    %1396 = vmatpush1.msra.mxu0 %v1262
    %1397 = vmatprep.subr.mxu0 0.0
    %1398 = vmatpush1.msra.mxu0 %v1263
    %1399 = vmatprep.subr.mxu0 0.0
    %1400 = vmatpush1.msra.mxu0 %v1264
    %1401 = vmatprep.subr.mxu0 0.0
    %1402 = vmatpush1.msra.mxu0 %v1265
    %1403 = vmatprep.subr.mxu0 0.0
    %1404 = vmatpush1.msra.mxu0 %v1266
    %1405 = vmatprep.subr.mxu0 0.0
    %1406 = vmatpush1.msra.mxu0 %v1267
    %1407 = vmatprep.subr.mxu0 0.0
    %1408 = vmatpush1.msra.mxu0 %v1268
    %1409 = vmatprep.subr.mxu0 0.0
    %1410 = vmatpush1.msra.mxu0 %v1269
    %1411 = vmatprep.mubr.f32.mxu0 %v1205
    %1412 = vmatmul.mubr.f32.gmra.mrb[0].mxu0 %v1204
    %v1413 = vpop.f32.mrb[0].mxu0
    %v1414 = vadd.f32 %v1344, %v1413
    %v1415 = vpop.f32.mrb[0].mxu0
    %1416 = vdwg.mxu0
    %1417 = vst [vmem:[#allocation11] sm:$0x3] %v1414
    // Predicated region
    $region42: #{tpu_custom_call.1} parent=1 // pred_check
      _
    $region43: #{tpu_custom_call.1} parent=1 // pred_check_branch
      %1419 = sbr.rel (0) target = $region45
    $region44: #{tpu_custom_call.1} parent=1 // pred_region
      %s1421 = ssub.s32 32, 32
      %1422 = vsyncadd [#allocation4], %s1421
      %s1424 = sshll.u32 [#allocation11], 4
      %s1425 = int_to_ptr.vmem [resolvable:$true] %s1424
      %1427 = dma.vmem_to_hbm [thread:$0]  %s1425, 32, %s5, [#allocation4]
    $region45: #{tpu_custom_call.1} parent=1 // pred_fallthru
      _
    // Predicated region
    $region46: #{tpu_custom_call.1} parent=1 // pred_check
      _
    $region47: #{tpu_custom_call.1} parent=1 // pred_check_branch
      %1429 = sbr.rel (0) target = $region49
    $region48: #{tpu_custom_call.1} parent=1 // pred_region
      %1430 = dma.done [#allocation4], 32
    $region49: #{tpu_custom_call.1} parent=1 // pred_fallthru
      _
    %1431 = vsyncpa [#allocation3], 1
    %1432 = vsyncpa [#allocation6], 1
    %1433 = vsyncpa [#allocation9], 1
    %1434 = vsyncpa [#allocation4], 1

</llo_original>
